<compile_context>
chip_gen: v7x
topology: tpu7x:2x2x1
jax: 0.10.0
libtpu: 0.0.40
codegen_flags: <defaults>
</compile_context>

<pallas_src>
import numpy as np
import jax
import jax.numpy as jnp
from jax.experimental import pallas as pl
from jax.experimental.pallas import tpu as pltpu

# ----------------------------- config (small, consistent with the module) ---
NUM_NODES = 16          # num_nodes
RNN_UNITS = 32          # rnn_units
INPUT_DIM = 4           # feature_dim
NUM_LAYERS = 2          # num_rnn_layers
MAX_DIFF_STEP = 2       # max_diffusion_step
BATCH = 2
K_MATS = MAX_DIFF_STEP + 1   # 'laplacian' filter -> 1 support -> K = max_diff_step + 1


# ----------------------------- Pallas kernel: whole encoder sequence --------
def make_encoder_kernel(bn, dims, wg_off, wc_off, b_off):
    """bn = B*N, dims = per-layer fused feature width D_l = c_in_l + U."""
    U, K, L = RNN_UNITS, K_MATS, NUM_LAYERS

    def kernel(x_ref, h0_ref, t_ref, w_ref, hid_ref, hstate):
        # x_ref:   (1, BN, C)        current timestep input block
        # h0_ref:  (L, BN, U)        initial hidden state (resident)
        # t_ref:   (K*BN, BN)        stacked block-diag [T_0; T_1; ...] (resident)
        # w_ref:   (rows, 3U)        packed weight slab (resident)
        # hid_ref: (1, L, BN, U)     per-step hidden output block
        # hstate:  (L, BN, U) VMEM   hidden state carried across grid steps
        step = pl.program_id(0)

        @pl.when(step == 0)
        def _init():
            hstate[...] = h0_ref[...]

        t_big = t_ref[...]                                    # (K*BN, BN)
        inp = x_ref[0]                                        # (BN, C)

        for layer in range(L):
            D = dims[layer]
            h = hstate[layer]                                 # (BN, U)

            # Fused diffusion of [x | h]: one fat dot gives T_k v for all k.
            v = jnp.concatenate([inp, h], axis=1)             # (BN, D)
            z = jnp.dot(t_big, v, preferred_element_type=jnp.float32)   # (K*BN, D)
            z_cat = jnp.concatenate(
                [z[k * bn:(k + 1) * bn, :] for k in range(K)], axis=1)  # (BN, K*D)

            # Fused gate matmul: columns = [r | u | x-part of c]; the K-term
            # Chebyshev sum is part of the contraction (stacked weights).
            wg = w_ref[wg_off[layer]:wg_off[layer] + K * D, :]          # (K*D, 3U)
            b = w_ref[b_off[layer]:b_off[layer] + 1, :]                 # (1, 3U)
            pre = jnp.dot(z_cat, wg, preferred_element_type=jnp.float32) + b
            r = jax.nn.sigmoid(pre[:, 0:U])
            u = jax.nn.sigmoid(pre[:, U:2 * U])
            cx = pre[:, 2 * U:3 * U]                          # b_c + sum_k (T_k x) Wx_c[k]

            # Candidate: diffuse r*h, then one stacked contraction over (k, U).
            zc = jnp.dot(t_big, r * h, preferred_element_type=jnp.float32)  # (K*BN, U)
            zc_cat = jnp.concatenate(
                [zc[k * bn:(k + 1) * bn, :] for k in range(K)], axis=1)     # (BN, K*U)
            wc = w_ref[wc_off[layer]:wc_off[layer] + K * U, 0:U]            # (K*U, U)
            c = jnp.tanh(cx + jnp.dot(zc_cat, wc, preferred_element_type=jnp.float32))

            h_new = u * h + (1.0 - u) * c
            hstate[layer] = h_new
            hid_ref[0, layer] = h_new
            inp = h_new

    return kernel


def _encoder_seq_call(x_seq, h0, t_big, w_slab, layout):
    """x_seq: (T, BN, C); h0: (L, BN, U). Returns per-step hiddens (T, L, BN, U)."""
    T, bn, _ = x_seq.shape
    L, U = NUM_LAYERS, RNN_UNITS
    kernel = make_encoder_kernel(bn, layout["dims"], layout["wg_off"],
                                 layout["wc_off"], layout["b_off"])
    grid_spec = pltpu.PrefetchScalarGridSpec(
        num_scalar_prefetch=0,
        grid=(T,),
        in_specs=[
            pl.BlockSpec((1, bn, INPUT_DIM), lambda t: (t, 0, 0)),   # streamed per step
            pl.BlockSpec((L, bn, U), lambda t: (0, 0, 0)),           # resident
            pl.BlockSpec(t_big.shape, lambda t: (0, 0)),             # resident
            pl.BlockSpec(w_slab.shape, lambda t: (0, 0)),            # resident
        ],
        out_specs=pl.BlockSpec((1, L, bn, U), lambda t: (t, 0, 0, 0)),
        scratch_shapes=[pltpu.VMEM((L, bn, U), jnp.float32)],
    )
    hid_seq = pl.pallas_call(
        kernel,
        out_shape=jax.ShapeDtypeStruct((T, L, bn, U), jnp.float32),
        grid_spec=grid_spec,
        compiler_params=pltpu.CompilerParams(dimension_semantics=("arbitrary",)),
    )(x_seq, h0, t_big, w_slab)
    return hid_seq


# ----------------------------- wrappers (mirror EncoderModel.forward) --------
def encoder_forward(inputs, hidden_state, w_slab, layout, t_big):
    """Single encoder step.  inputs: (B, N*input_dim); hidden_state: (L, B, N*U) or None.

    Returns (output (B, N*U), hidden (L, B, N*U)) — same as EncoderModel.forward.
    """
    B = inputs.shape[0]
    BN = B * NUM_NODES
    assert t_big.shape[1] == BN, "diffusion operator was built for a different batch size"
    if hidden_state is None:
        hidden_state = jnp.zeros((NUM_LAYERS, B, NUM_NODES * RNN_UNITS), jnp.float32)

    x = inputs.reshape(1, BN, INPUT_DIM)                       # node-major rows, T=1
    h0 = hidden_state.reshape(NUM_LAYERS, BN, RNN_UNITS)
    hid_seq = _encoder_seq_call(x, h0, t_big, w_slab, layout)  # (1, L, BN, U)
    hid = hid_seq[0].reshape(NUM_LAYERS, B, NUM_NODES * RNN_UNITS)
    return hid[-1], hid


def encoder_forward_seq(inputs_seq, hidden_state, w_slab, layout, t_big):
    """T encoder steps fused in ONE pallas_call (equivalent to calling forward T times).

    inputs_seq: (T, B, N*input_dim).  Returns (outputs (T, B, N*U), final hidden (L, B, N*U)).
    """
    T, B = inputs_seq.shape[:2]
    BN = B * NUM_NODES
    assert t_big.shape[1] == BN, "diffusion operator was built for a different batch size"
    if hidden_state is None:
        hidden_state = jnp.zeros((NUM_LAYERS, B, NUM_NODES * RNN_UNITS), jnp.float32)

    x = inputs_seq.reshape(T, BN, INPUT_DIM)
    h0 = hidden_state.reshape(NUM_LAYERS, BN, RNN_UNITS)
    hid_seq = _encoder_seq_call(x, h0, t_big, w_slab, layout)  # (T, L, BN, U)
    hid_seq = hid_seq.reshape(T, NUM_LAYERS, B, NUM_NODES * RNN_UNITS)
    return hid_seq[:, -1], hid_seq[-1]


# ----------------------------- host-side precompute / packing ----------------
def scaled_laplacian(adj):
    """DCRNN utils.calculate_scaled_laplacian (filter_type='laplacian')."""
    adj = np.maximum(adj, adj.T)                       # symmetrize
    d = adj.sum(axis=1)
    d_inv_sqrt = np.where(d > 0, 1.0 / np.sqrt(d), 0.0)
    lap = np.eye(adj.shape[0]) - (adj * d_inv_sqrt[:, None]) * d_inv_sqrt[None, :]
    lambda_max = float(np.linalg.eigvalsh(lap).max())
    return ((2.0 / lambda_max) * lap - np.eye(adj.shape[0])).astype(np.float32)


def build_diffusion_operator(support, num_matrices, batch):
    """Stacked block-diagonal Chebyshev operator [blkdiag_B(T_0); ...; blkdiag_B(T_{K-1})].

    T_0 = I is now included.  Shape (K*B*N, B*N).
    """
    s = np.asarray(support, dtype=np.float64)
    n = s.shape[0]
    mats = [np.eye(n)]
    if num_matrices >= 2:
        t_km2, t_km1 = np.eye(n), s
        mats.append(t_km1)
        for _ in range(2, num_matrices):
            t_k = 2.0 * s @ t_km1 - t_km2
            mats.append(t_k)
            t_km2, t_km1 = t_km1, t_k
    eye_b = np.eye(batch)
    big = np.concatenate([np.kron(eye_b, m) for m in mats], axis=0)
    return jnp.asarray(big.astype(np.float32))


def init_layer_params(key, c_in, units, num_matrices):
    ks = jax.random.split(key, 9)
    n = lambda k, shape, scale=0.1: (scale * jax.random.normal(k, shape)).astype(jnp.float32)
    return {
        "wx_r": n(ks[0], (num_matrices, c_in, units)),
        "wh_r": n(ks[1], (num_matrices, units, units)),
        "b_r":  n(ks[2], (1, units)),
        "wx_u": n(ks[3], (num_matrices, c_in, units)),
        "wh_u": n(ks[4], (num_matrices, units, units)),
        "b_u":  n(ks[5], (1, units)),
        "wx_c": n(ks[6], (num_matrices, c_in, units)),
        "wh_c": n(ks[7], (num_matrices, units, units)),
        "b_c":  n(ks[8], (1, units)),
    }


def pack_params(layer_params):
    """Pack ALL layers' weights into one (rows, 3U) slab + static-offset layout.

    Per layer l (c_in_l -> U), with D_l = c_in_l + U:
      Wg_l (K*D_l, 3U): rows stacked over k of [Wx_k ; Wh_k] where Wx_k = [wx_r|wx_u|wx_c][k]
                        and Wh_k = [wh_r|wh_u|0][k] (c gate uses r*h, handled separately).
      Wc_l (K*U, U)  : rows stacked over k of wh_c[k] (columns zero-padded to 3U in the slab).
      b_l  (1, 3U)   : [b_r | b_u | b_c].
    Every section start is padded to a multiple of 8 rows (sublane alignment).
    """
    U, K = RNN_UNITS, K_MATS
    W3 = 3 * U
    blocks = []
    layout = {"dims": [], "wg_off": [], "wc_off": [], "b_off": []}
    row = 0

    def _append(mat):
        nonlocal row
        pad_r = (-mat.shape[0]) % 8
        mat = jnp.pad(mat, ((0, pad_r), (0, W3 - mat.shape[1])))
        blocks.append(mat)
        start = row
        row += mat.shape[0]
        return start

    for p in layer_params:
        c_in = p["wx_r"].shape[1]
        D = c_in + U
        layout["dims"].append(D)
        wg_k = []
        for k in range(K):
            wx_k = jnp.concatenate([p["wx_r"][k], p["wx_u"][k], p["wx_c"][k]], axis=1)  # (c_in, 3U)
            wh_k = jnp.concatenate([p["wh_r"][k], p["wh_u"][k],
                                    jnp.zeros((U, U), jnp.float32)], axis=1)            # (U, 3U)
            wg_k.append(jnp.concatenate([wx_k, wh_k], axis=0))                          # (D, 3U)
        layout["wg_off"].append(_append(jnp.concatenate(wg_k, axis=0)))                 # (K*D, 3U)
        layout["wc_off"].append(_append(
            jnp.concatenate([p["wh_c"][k] for k in range(K)], axis=0)))                 # (K*U, U)
        layout["b_off"].append(_append(
            jnp.concatenate([p["b_r"], p["b_u"], p["b_c"]], axis=1)))                   # (1, 3U)

    slab = jnp.concatenate(blocks, axis=0)
    layout["rows"] = row
    return slab, layout


# ----------------------------- pure-JAX reference (for sanity) ---------------
def _cheb_terms_ref(v, s, K):
    terms = [v]
    if K > 1:
        t1 = jnp.einsum('nm,bmc->bnc', s, v)
        terms.append(t1)
        tkm2, tkm1 = v, t1
        for _ in range(2, K):
            tk = 2.0 * jnp.einsum('nm,bmc->bnc', s, tkm1) - tkm2
            terms.append(tk)
            tkm2, tkm1 = tkm1, tk
    return terms


def _gconv_ref(tx, th, wx, wh, b):
    out = b[None]
    for k in range(wx.shape[0]):
        out = out + jnp.einsum('bnc,co->bno', tx[k], wx[k])
        out = out + jnp.einsum('bnc,co->bno', th[k], wh[k])
    return out


def encoder_forward_ref(inputs, hidden_state, layer_params, support):
    B = inputs.shape[0]
    output = inputs.reshape(B, NUM_NODES, -1)
    new_hidden = []
    for l in range(NUM_LAYERS):
        p = layer_params[l]
        h = hidden_state[l].reshape(B, NUM_NODES, RNN_UNITS)
        K = p["wx_r"].shape[0]
        tx = _cheb_terms_ref(output, support, K)
        th = _cheb_terms_ref(h, support, K)
        r = jax.nn.sigmoid(_gconv_ref(tx, th, p["wx_r"], p["wh_r"], p["b_r"]))
        u = jax.nn.sigmoid(_gconv_ref(tx, th, p["wx_u"], p["wh_u"], p["b_u"]))
        trh = _cheb_terms_ref(r * h, support, K)
        c = jnp.tanh(_gconv_ref(tx, trh, p["wx_c"], p["wh_c"], p["b_c"]))
        h_new = u * h + (1.0 - u) * c
        new_hidden.append(h_new.reshape(B, NUM_NODES * RNN_UNITS))
        output = h_new
    return output.reshape(B, NUM_NODES * RNN_UNITS), jnp.stack(new_hidden)


# ----------------------------- main -------------------------------------------
if __name__ == "__main__":
    root = jax.random.PRNGKey(0)
    k_adj, k_in, k_h, k_p0, k_p1, k_seq = jax.random.split(root, 6)

    # deterministic synthetic adjacency -> scaled laplacian support
    adj = np.abs(np.asarray(jax.random.uniform(k_adj, (NUM_NODES, NUM_NODES))))
    np.fill_diagonal(adj, 0.0)
    support_np = scaled_laplacian(adj)
    support = jnp.asarray(support_np)

    layer_params = [
        init_layer_params(k_p0, INPUT_DIM, RNN_UNITS, K_MATS),   # layer 0: input_dim -> units
        init_layer_params(k_p1, RNN_UNITS, RNN_UNITS, K_MATS),   # layer 1: units -> units
    ]
    w_slab, layout = pack_params(layer_params)
    t_big = build_diffusion_operator(support_np, K_MATS, BATCH)

    inputs = jax.random.normal(k_in, (BATCH, NUM_NODES * INPUT_DIM), jnp.float32)
    hidden = 0.1 * jax.random.normal(
        k_h, (NUM_LAYERS, BATCH, NUM_NODES * RNN_UNITS), jnp.float32)

    # --- single step (exact EncoderModel.forward semantics) ---
    out, new_hidden = encoder_forward(inputs, hidden, w_slab, layout, t_big)
    out = jax.block_until_ready(out)
    new_hidden = jax.block_until_ready(new_hidden)

    out_ref, hid_ref = encoder_forward_ref(inputs, hidden, layer_params, support)
    np.testing.assert_allclose(np.asarray(out), np.asarray(out_ref), rtol=1e-4, atol=1e-4)
    np.testing.assert_allclose(np.asarray(new_hidden), np.asarray(hid_ref), rtol=1e-4, atol=1e-4)
    assert out.shape == (BATCH, NUM_NODES * RNN_UNITS)
    assert new_hidden.shape == (NUM_LAYERS, BATCH, NUM_NODES * RNN_UNITS)

    # --- T-step sequence: time loop fused into ONE pallas_call (perf review #1) ---
    T = 8
    inputs_seq = jax.random.normal(k_seq, (T, BATCH, NUM_NODES * INPUT_DIM), jnp.float32)
    outs_seq, final_hidden = encoder_forward_seq(inputs_seq, hidden, w_slab, layout, t_big)
    outs_seq = jax.block_until_ready(outs_seq)
    final_hidden = jax.block_until_ready(final_hidden)

    h_ref = hidden
    outs_ref = []
    for t in range(T):
        o_t, h_ref = encoder_forward_ref(inputs_seq[t], h_ref, layer_params, support)
        outs_ref.append(o_t)
    outs_ref = jnp.stack(outs_ref)
    np.testing.assert_allclose(np.asarray(outs_seq), np.asarray(outs_ref), rtol=1e-3, atol=1e-3)
    np.testing.assert_allclose(np.asarray(final_hidden), np.asarray(h_ref), rtol=1e-3, atol=1e-3)

    print("KERNEL_OK")
</pallas_src>

<mosaic_0001>
module attributes {stable_mosaic.version = 11 : i64} {
  func.func @kernel(%arg0: i32, %arg1: memref<1x32x4xf32, #tpu.memory_space<vmem>>, %arg2: memref<2x32x32xf32, #tpu.memory_space<vmem>>, %arg3: memref<96x32xf32, #tpu.memory_space<vmem>>, %arg4: memref<512x96xf32, #tpu.memory_space<vmem>>, %arg5: memref<1x2x32x32xf32, #tpu.memory_space<vmem>>, %arg6: memref<2x32x32xf32, #tpu.memory_space<vmem>>) attributes {dimension_semantics = [#tpu.dimension_semantics<arbitrary>], iteration_bounds = array<i64: 1>, scalar_prefetch = 0 : i64, scratch_operands = 1 : i64, tpu.core_type = #tpu.core_type<tc>, window_params = [{transform_indices = @transform_0, window_bounds = array<i64: 1, 32, 4>}, {pipeline_mode = #tpu.pipeline_mode<synchronous>, transform_indices = @transform_1, window_bounds = array<i64: 2, 32, 32>}, {pipeline_mode = #tpu.pipeline_mode<synchronous>, transform_indices = @transform_2, window_bounds = array<i64: 96, 32>}, {pipeline_mode = #tpu.pipeline_mode<synchronous>, transform_indices = @transform_3, window_bounds = array<i64: 512, 96>}, {transform_indices = @transform_4, window_bounds = array<i64: 1, 2, 32, 32>}]} {
    %c0_i32 = arith.constant 0 : i32
    %0 = arith.cmpi eq, %arg0, %c0_i32 : i32
    %1 = arith.extui %0 : i1 to i32
    %c0_i32_0 = arith.constant 0 : i32
    %2 = arith.cmpi ne, %1, %c0_i32_0 : i32
    scf.if %2 {
      %c0_44 = arith.constant 0 : index
      %c0_45 = arith.constant 0 : index
      %c0_46 = arith.constant 0 : index
      %100 = vector.load %arg2[%c0_44, %c0_45, %c0_46] : memref<2x32x32xf32, #tpu.memory_space<vmem>>, vector<2x32x32xf32>
      %c0_47 = arith.constant 0 : index
      %c0_48 = arith.constant 0 : index
      %c0_49 = arith.constant 0 : index
      %101 = vector.load %arg6[%c0_47, %c0_48, %c0_49] : memref<2x32x32xf32, #tpu.memory_space<vmem>>, vector<2x32x32xf32>
      tpu.vector_store %arg6[%c0_47, %c0_48, %c0_49], %100 {strides = array<i32>} : memref<2x32x32xf32, #tpu.memory_space<vmem>>, vector<2x32x32xf32>,
    } else {
    }
    %c0 = arith.constant 0 : index
    %c0_1 = arith.constant 0 : index
    %3 = vector.load %arg3[%c0, %c0_1] : memref<96x32xf32, #tpu.memory_space<vmem>>, vector<96x32xf32>
    %c0_2 = arith.constant 0 : index
    %c0_3 = arith.constant 0 : index
    %c0_4 = arith.constant 0 : index
    %4 = vector.load %arg1[%c0_2, %c0_3, %c0_4] : memref<1x32x4xf32, #tpu.memory_space<vmem>>, vector<1x32x4xf32>
    %5 = vector.shape_cast %4 : vector<1x32x4xf32> to vector<32x4xf32>
    %c0_5 = arith.constant 0 : index
    %c0_6 = arith.constant 0 : index
    %c0_7 = arith.constant 0 : index
    %6 = vector.load %arg6[%c0_5, %c0_6, %c0_7] : memref<2x32x32xf32, #tpu.memory_space<vmem>>, vector<1x32x32xf32>
    %7 = vector.shape_cast %6 : vector<1x32x32xf32> to vector<32x32xf32>
    %8 = tpu.concatenate %5, %7 in 1 : vector<32x4xf32>, vector<32x32xf32> -> vector<32x36xf32>
    %cst = arith.constant dense<0.000000e+00> : vector<96x36xf32>
    %9 = tpu.matmul %3, %8, %cst {dimension_numbers = #tpu.dot_dimension_numbers<[1], [0], [0], [1], [0, 0, 1, 1], [], []>} : vector<96x32xf32>, vector<32x36xf32>, vector<96x36xf32> -> vector<96x36xf32>
    %10 = vector.extract_strided_slice %9 {offsets = [0, 0], sizes = [32, 36], strides = [1, 1]} : vector<96x36xf32> to vector<32x36xf32>
    %11 = vector.extract_strided_slice %9 {offsets = [32, 0], sizes = [32, 36], strides = [1, 1]} : vector<96x36xf32> to vector<32x36xf32>
    %12 = vector.extract_strided_slice %9 {offsets = [64, 0], sizes = [32, 36], strides = [1, 1]} : vector<96x36xf32> to vector<32x36xf32>
    %13 = tpu.concatenate %10, %11, %12 in 1 : vector<32x36xf32>, vector<32x36xf32>, vector<32x36xf32> -> vector<32x108xf32>
    %c0_8 = arith.constant 0 : index
    %c0_9 = arith.constant 0 : index
    %14 = vector.load %arg4[%c0_8, %c0_9] : memref<512x96xf32, #tpu.memory_space<vmem>>, vector<108x96xf32>
    %c208 = arith.constant 208 : index
    %c0_10 = arith.constant 0 : index
    %15 = vector.load %arg4[%c208, %c0_10] : memref<512x96xf32, #tpu.memory_space<vmem>>, vector<1x96xf32>
    %cst_11 = arith.constant dense<0.000000e+00> : vector<32x96xf32>
    %16 = tpu.matmul %13, %14, %cst_11 {dimension_numbers = #tpu.dot_dimension_numbers<[1], [0], [0], [1], [0, 0, 1, 1], [], []>} : vector<32x108xf32>, vector<108x96xf32>, vector<32x96xf32> -> vector<32x96xf32>
    %17 = vector.broadcast %15 : vector<1x96xf32> to vector<32x96xf32>
    %18 = arith.addf %16, %17 : vector<32x96xf32>
    %19 = vector.extract_strided_slice %18 {offsets = [0, 0], sizes = [32, 32], strides = [1, 1]} : vector<32x96xf32> to vector<32x32xf32>
    %20 = arith.negf %19 : vector<32x32xf32>
    %21 = math.exp %20 : vector<32x32xf32>
    %cst_12 = arith.constant 1.000000e+00 : f32
    %22 = vector.broadcast %cst_12 : f32 to vector<32x32xf32>
    %23 = arith.addf %22, %21 : vector<32x32xf32>
    %24 = arith.divf %22, %23 : vector<32x32xf32>
    %25 = vector.extract_strided_slice %18 {offsets = [0, 32], sizes = [32, 32], strides = [1, 1]} : vector<32x96xf32> to vector<32x32xf32>
    %26 = arith.negf %25 : vector<32x32xf32>
    %27 = math.exp %26 : vector<32x32xf32>
    %cst_13 = arith.constant 1.000000e+00 : f32
    %28 = vector.broadcast %cst_13 : f32 to vector<32x32xf32>
    %29 = arith.addf %28, %27 : vector<32x32xf32>
    %30 = arith.divf %28, %29 : vector<32x32xf32>
    %31 = vector.extract_strided_slice %18 {offsets = [0, 64], sizes = [32, 32], strides = [1, 1]} : vector<32x96xf32> to vector<32x32xf32>
    %32 = arith.mulf %24, %7 : vector<32x32xf32>
    %cst_14 = arith.constant dense<0.000000e+00> : vector<96x32xf32>
    %33 = tpu.matmul %3, %32, %cst_14 {dimension_numbers = #tpu.dot_dimension_numbers<[1], [0], [0], [1], [0, 0, 1, 1], [], []>} : vector<96x32xf32>, vector<32x32xf32>, vector<96x32xf32> -> vector<96x32xf32>
    %34 = vector.extract_strided_slice %33 {offsets = [0, 0], sizes = [32, 32], strides = [1, 1]} : vector<96x32xf32> to vector<32x32xf32>
    %35 = vector.extract_strided_slice %33 {offsets = [32, 0], sizes = [32, 32], strides = [1, 1]} : vector<96x32xf32> to vector<32x32xf32>
    %36 = vector.extract_strided_slice %33 {offsets = [64, 0], sizes = [32, 32], strides = [1, 1]} : vector<96x32xf32> to vector<32x32xf32>
    %37 = tpu.concatenate %34, %35, %36 in 1 : vector<32x32xf32>, vector<32x32xf32>, vector<32x32xf32> -> vector<32x96xf32>
    %c112 = arith.constant 112 : index
    %c0_15 = arith.constant 0 : index
    %38 = vector.load %arg4[%c112, %c0_15] : memref<512x96xf32, #tpu.memory_space<vmem>>, vector<96x32xf32>
    %cst_16 = arith.constant dense<0.000000e+00> : vector<32x32xf32>
    %39 = tpu.matmul %37, %38, %cst_16 {dimension_numbers = #tpu.dot_dimension_numbers<[1], [0], [0], [1], [0, 0, 1, 1], [], []>} : vector<32x96xf32>, vector<96x32xf32>, vector<32x32xf32> -> vector<32x32xf32>
    %40 = arith.addf %31, %39 : vector<32x32xf32>
    %41 = math.tanh %40 : vector<32x32xf32>
    %42 = arith.mulf %30, %7 : vector<32x32xf32>
    %cst_17 = arith.constant 1.000000e+00 : f32
    %43 = vector.broadcast %cst_17 : f32 to vector<32x32xf32>
    %44 = arith.subf %43, %30 : vector<32x32xf32>
    %45 = arith.mulf %44, %41 : vector<32x32xf32>
    %46 = arith.addf %42, %45 : vector<32x32xf32>
    %c0_18 = arith.constant 0 : index
    %c0_19 = arith.constant 0 : index
    %c0_20 = arith.constant 0 : index
    %47 = vector.load %arg6[%c0_18, %c0_19, %c0_20] : memref<2x32x32xf32, #tpu.memory_space<vmem>>, vector<1x32x32xf32>
    %48 = vector.shape_cast %47 : vector<1x32x32xf32> to vector<32x32xf32>
    %49 = vector.shape_cast %46 : vector<32x32xf32> to vector<1x32x32xf32>
    tpu.vector_store %arg6[%c0_18, %c0_19, %c0_20], %49 {strides = array<i32>} : memref<2x32x32xf32, #tpu.memory_space<vmem>>, vector<1x32x32xf32>,
    %c0_21 = arith.constant 0 : index
    %c0_22 = arith.constant 0 : index
    %c0_23 = arith.constant 0 : index
    %c0_24 = arith.constant 0 : index
    %50 = vector.load %arg5[%c0_21, %c0_22, %c0_23, %c0_24] : memref<1x2x32x32xf32, #tpu.memory_space<vmem>>, vector<1x1x32x32xf32>
    %51 = vector.shape_cast %50 : vector<1x1x32x32xf32> to vector<32x32xf32>
    %52 = vector.shape_cast %46 : vector<32x32xf32> to vector<1x1x32x32xf32>
    tpu.vector_store %arg5[%c0_21, %c0_22, %c0_23, %c0_24], %52 {strides = array<i32>} : memref<1x2x32x32xf32, #tpu.memory_space<vmem>>, vector<1x1x32x32xf32>,
    %c1 = arith.constant 1 : index
    %c0_25 = arith.constant 0 : index
    %c0_26 = arith.constant 0 : index
    %53 = vector.load %arg6[%c1, %c0_25, %c0_26] : memref<2x32x32xf32, #tpu.memory_space<vmem>>, vector<1x32x32xf32>
    %54 = vector.shape_cast %53 : vector<1x32x32xf32> to vector<32x32xf32>
    %55 = tpu.concatenate %46, %54 in 1 : vector<32x32xf32>, vector<32x32xf32> -> vector<32x64xf32>
    %cst_27 = arith.constant dense<0.000000e+00> : vector<96x64xf32>
    %56 = tpu.matmul %3, %55, %cst_27 {dimension_numbers = #tpu.dot_dimension_numbers<[1], [0], [0], [1], [0, 0, 1, 1], [], []>} : vector<96x32xf32>, vector<32x64xf32>, vector<96x64xf32> -> vector<96x64xf32>
    %57 = vector.extract_strided_slice %56 {offsets = [0, 0], sizes = [32, 64], strides = [1, 1]} : vector<96x64xf32> to vector<32x64xf32>
    %58 = vector.extract_strided_slice %56 {offsets = [32, 0], sizes = [32, 64], strides = [1, 1]} : vector<96x64xf32> to vector<32x64xf32>
    %59 = vector.extract_strided_slice %56 {offsets = [64, 0], sizes = [32, 64], strides = [1, 1]} : vector<96x64xf32> to vector<32x64xf32>
    %60 = tpu.concatenate %57, %58, %59 in 1 : vector<32x64xf32>, vector<32x64xf32>, vector<32x64xf32> -> vector<32x192xf32>
    %c216 = arith.constant 216 : index
    %c0_28 = arith.constant 0 : index
    %61 = vector.load %arg4[%c216, %c0_28] : memref<512x96xf32, #tpu.memory_space<vmem>>, vector<192x96xf32>
    %c504 = arith.constant 504 : index
    %c0_29 = arith.constant 0 : index
    %62 = vector.load %arg4[%c504, %c0_29] : memref<512x96xf32, #tpu.memory_space<vmem>>, vector<1x96xf32>
    %cst_30 = arith.constant dense<0.000000e+00> : vector<32x96xf32>
    %63 = tpu.matmul %60, %61, %cst_30 {dimension_numbers = #tpu.dot_dimension_numbers<[1], [0], [0], [1], [0, 0, 1, 1], [], []>} : vector<32x192xf32>, vector<192x96xf32>, vector<32x96xf32> -> vector<32x96xf32>
    %64 = vector.broadcast %62 : vector<1x96xf32> to vector<32x96xf32>
    %65 = arith.addf %63, %64 : vector<32x96xf32>
    %66 = vector.extract_strided_slice %65 {offsets = [0, 0], sizes = [32, 32], strides = [1, 1]} : vector<32x96xf32> to vector<32x32xf32>
    %67 = arith.negf %66 : vector<32x32xf32>
    %68 = math.exp %67 : vector<32x32xf32>
    %cst_31 = arith.constant 1.000000e+00 : f32
    %69 = vector.broadcast %cst_31 : f32 to vector<32x32xf32>
    %70 = arith.addf %69, %68 : vector<32x32xf32>
    %71 = arith.divf %69, %70 : vector<32x32xf32>
    %72 = vector.extract_strided_slice %65 {offsets = [0, 32], sizes = [32, 32], strides = [1, 1]} : vector<32x96xf32> to vector<32x32xf32>
    %73 = arith.negf %72 : vector<32x32xf32>
    %74 = math.exp %73 : vector<32x32xf32>
    %cst_32 = arith.constant 1.000000e+00 : f32
    %75 = vector.broadcast %cst_32 : f32 to vector<32x32xf32>
    %76 = arith.addf %75, %74 : vector<32x32xf32>
    %77 = arith.divf %75, %76 : vector<32x32xf32>
    %78 = vector.extract_strided_slice %65 {offsets = [0, 64], sizes = [32, 32], strides = [1, 1]} : vector<32x96xf32> to vector<32x32xf32>
    %79 = arith.mulf %71, %54 : vector<32x32xf32>
    %cst_33 = arith.constant dense<0.000000e+00> : vector<96x32xf32>
    %80 = tpu.matmul %3, %79, %cst_33 {dimension_numbers = #tpu.dot_dimension_numbers<[1], [0], [0], [1], [0, 0, 1, 1], [], []>} : vector<96x32xf32>, vector<32x32xf32>, vector<96x32xf32> -> vector<96x32xf32>
    %81 = vector.extract_strided_slice %80 {offsets = [0, 0], sizes = [32, 32], strides = [1, 1]} : vector<96x32xf32> to vector<32x32xf32>
    %82 = vector.extract_strided_slice %80 {offsets = [32, 0], sizes = [32, 32], strides = [1, 1]} : vector<96x32xf32> to vector<32x32xf32>
    %83 = vector.extract_strided_slice %80 {offsets = [64, 0], sizes = [32, 32], strides = [1, 1]} : vector<96x32xf32> to vector<32x32xf32>
    %84 = tpu.concatenate %81, %82, %83 in 1 : vector<32x32xf32>, vector<32x32xf32>, vector<32x32xf32> -> vector<32x96xf32>
    %c408 = arith.constant 408 : index
    %c0_34 = arith.constant 0 : index
    %85 = vector.load %arg4[%c408, %c0_34] : memref<512x96xf32, #tpu.memory_space<vmem>>, vector<96x32xf32>
    %cst_35 = arith.constant dense<0.000000e+00> : vector<32x32xf32>
    %86 = tpu.matmul %84, %85, %cst_35 {dimension_numbers = #tpu.dot_dimension_numbers<[1], [0], [0], [1], [0, 0, 1, 1], [], []>} : vector<32x96xf32>, vector<96x32xf32>, vector<32x32xf32> -> vector<32x32xf32>
    %87 = arith.addf %78, %86 : vector<32x32xf32>
    %88 = math.tanh %87 : vector<32x32xf32>
    %89 = arith.mulf %77, %54 : vector<32x32xf32>
    %cst_36 = arith.constant 1.000000e+00 : f32
    %90 = vector.broadcast %cst_36 : f32 to vector<32x32xf32>
    %91 = arith.subf %90, %77 : vector<32x32xf32>
    %92 = arith.mulf %91, %88 : vector<32x32xf32>
    %93 = arith.addf %89, %92 : vector<32x32xf32>
    %c1_37 = arith.constant 1 : index
    %c0_38 = arith.constant 0 : index
    %c0_39 = arith.constant 0 : index
    %94 = vector.load %arg6[%c1_37, %c0_38, %c0_39] : memref<2x32x32xf32, #tpu.memory_space<vmem>>, vector<1x32x32xf32>
    %95 = vector.shape_cast %94 : vector<1x32x32xf32> to vector<32x32xf32>
    %96 = vector.shape_cast %93 : vector<32x32xf32> to vector<1x32x32xf32>
    tpu.vector_store %arg6[%c1_37, %c0_38, %c0_39], %96 {strides = array<i32>} : memref<2x32x32xf32, #tpu.memory_space<vmem>>, vector<1x32x32xf32>,
    %c0_40 = arith.constant 0 : index
    %c1_41 = arith.constant 1 : index
    %c0_42 = arith.constant 0 : index
    %c0_43 = arith.constant 0 : index
    %97 = vector.load %arg5[%c0_40, %c1_41, %c0_42, %c0_43] : memref<1x2x32x32xf32, #tpu.memory_space<vmem>>, vector<1x1x32x32xf32>
    %98 = vector.shape_cast %97 : vector<1x1x32x32xf32> to vector<32x32xf32>
    %99 = vector.shape_cast %93 : vector<32x32xf32> to vector<1x1x32x32xf32>
    tpu.vector_store %arg5[%c0_40, %c1_41, %c0_42, %c0_43], %99 {strides = array<i32>} : memref<1x2x32x32xf32, #tpu.memory_space<vmem>>, vector<1x1x32x32xf32>,
    return
  }
  func.func @transform_0(%arg0: i32) -> (i32, i32, i32) {
    %c0_i32 = arith.constant 0 : i32
    %c0_i32_0 = arith.constant 0 : i32
    %c0_i32_1 = arith.constant 0 : i32
    return %arg0, %c0_i32, %c0_i32_0 : i32, i32, i32
  }
  func.func @transform_1(%arg0: i32) -> (i32, i32, i32) {
    %c0_i32 = arith.constant 0 : i32
    %c0_i32_0 = arith.constant 0 : i32
    %c0_i32_1 = arith.constant 0 : i32
    %c0_i32_2 = arith.constant 0 : i32
    return %c0_i32, %c0_i32_0, %c0_i32_1 : i32, i32, i32
  }
  func.func @transform_2(%arg0: i32) -> (i32, i32) {
    %c0_i32 = arith.constant 0 : i32
    %c0_i32_0 = arith.constant 0 : i32
    %c0_i32_1 = arith.constant 0 : i32
    return %c0_i32, %c0_i32_0 : i32, i32
  }
  func.func @transform_3(%arg0: i32) -> (i32, i32) {
    %c0_i32 = arith.constant 0 : i32
    %c0_i32_0 = arith.constant 0 : i32
    %c0_i32_1 = arith.constant 0 : i32
    return %c0_i32, %c0_i32_0 : i32, i32
  }
  func.func @transform_4(%arg0: i32) -> (i32, i32, i32, i32) {
    %c0_i32 = arith.constant 0 : i32
    %c0_i32_0 = arith.constant 0 : i32
    %c0_i32_1 = arith.constant 0 : i32
    %c0_i32_2 = arith.constant 0 : i32
    return %arg0, %c0_i32, %c0_i32_0, %c0_i32_1 : i32, i32, i32, i32
  }
}

</mosaic_0001>

<llo_original>
// kernel: tpu_custom_call.1
$region0: #{tpu_custom_call.1}
  #allocation0 [shape = 'u32[]', space=smem, size = 0x4, offset = 0x4, fixed_abs, tag = 'smem constant byte address 0x4 - core index']
  #allocation1 [shape = 'u32[144,128]{1,0:T(1,128)}', space=vmem, size = 0x12000, scoped, tag = 'internal scratch']
  #allocation2 [shape = 'f32[2,32,32]{2,1,0:T(8,128)}', space=vmem, size = 0x8000, scoped, tag = 'scratch operand']
  %s0 = inlined_call_operand.vmem [shape: f32[1,32,4], index: 0, kind: input, shape index: {}]
  %s1 = inlined_call_operand.vmem [shape: f32[2,32,32], index: 1, kind: input, shape index: {}]
  %s2 = inlined_call_operand.vmem [shape: f32[96,32], index: 2, kind: input, shape index: {}]
  %s3 = inlined_call_operand.vmem [shape: f32[512,96], index: 3, kind: input, shape index: {}]
  %s4 = inlined_call_operand.hbm [shape: f32[1,2,32,32], index: 4, kind: output, shape index: {}]
  %s5 = sld [smem:[#allocation0]]
  $region30: #{tpu_custom_call.1} parent=0
    _
  %s7 = ssub.s32 1, %s5
  %s8 = scalar_select 0, %s7, %s5
  $region1: #{tpu_custom_call.1} parent=0
    #allocation3 [shape = 'u8[32768]{0}', space=vmem, size = 0x8000, scoped, tag = 'output window, operand 0, single buffered']
    #allocation4 [shape = 's32[1]{0}', space=sflag, size = 0x4, scoped, tag = 'scoped memory for tpu_custom_call.1']
    %9 = vsyncpa [#allocation4], 0
    // Predicated region
    $region2: #{tpu_custom_call.1} parent=1 // pred_check
      _
    $region3: #{tpu_custom_call.1} parent=1 // pred_check_branch
      %11 = sbr.rel (0) target = $region5
    $region4: #{tpu_custom_call.1} parent=1 // pred_region
      _
    $region5: #{tpu_custom_call.1} parent=1 // pred_fallthru
      _
    // Predicated region
    $region6: #{tpu_custom_call.1} parent=1 // pred_check
      _
    $region7: #{tpu_custom_call.1} parent=1 // pred_check_branch
      %13 = sbr.rel (0) target = $region9
    $region8: #{tpu_custom_call.1} parent=1 // pred_region
      _
    $region9: #{tpu_custom_call.1} parent=1 // pred_fallthru
      _
    // Predicated region
    $region10: #{tpu_custom_call.1} parent=1 // pred_check
      _
    $region11: #{tpu_custom_call.1} parent=1 // pred_check_branch
      %15 = sbr.rel (0) target = $region13
    $region12: #{tpu_custom_call.1} parent=1 // pred_region
      _
    $region13: #{tpu_custom_call.1} parent=1 // pred_fallthru
      _
    // Predicated region
    $region14: #{tpu_custom_call.1} parent=1 // pred_check
      _
    $region15: #{tpu_custom_call.1} parent=1 // pred_check_branch
      %17 = sbr.rel (0) target = $region17
    $region16: #{tpu_custom_call.1} parent=1 // pred_region
      _
    $region17: #{tpu_custom_call.1} parent=1 // pred_fallthru
      _
    %p18 = scmp.eq.s32.totalorder 0, 0
    // Predicated region
    $region18: #{tpu_custom_call.1} parent=1 // pred_check
      %p19 = pneg %p18
    $region19: #{tpu_custom_call.1} parent=1 // pred_check_branch
      %21 = sbr.rel (%p19) target = $region21
    $region20: #{tpu_custom_call.1} parent=1 // pred_region
      %v22 = vld [vmem:[%s1] sm:$0xff]
      %v23 = vld [vmem:[%s1 + $0x8] sm:$0xff]
      %v24 = vld [vmem:[%s1 + $0x10] sm:$0xff]
      %v25 = vld [vmem:[%s1 + $0x18] sm:$0xff]
      %v26 = vld [vmem:[%s1 + $0x20] sm:$0xff]
      %v27 = vld [vmem:[%s1 + $0x28] sm:$0xff]
      %v28 = vld [vmem:[%s1 + $0x30] sm:$0xff]
      %v29 = vld [vmem:[%s1 + $0x38] sm:$0xff]
      %vm30 = vcmask 261120
      %31 = vst.msk [vmem:[#allocation2] sm:$0xff] %vm30, %v22
      %32 = vst.msk [vmem:[#allocation2 + $0x8] sm:$0xff] %vm30, %v23
      %33 = vst.msk [vmem:[#allocation2 + $0x10] sm:$0xff] %vm30, %v24
      %34 = vst.msk [vmem:[#allocation2 + $0x18] sm:$0xff] %vm30, %v25
      %35 = vst.msk [vmem:[#allocation2 + $0x20] sm:$0xff] %vm30, %v26
      %36 = vst.msk [vmem:[#allocation2 + $0x28] sm:$0xff] %vm30, %v27
      %37 = vst.msk [vmem:[#allocation2 + $0x30] sm:$0xff] %vm30, %v28
      %38 = vst.msk [vmem:[#allocation2 + $0x38] sm:$0xff] %vm30, %v29
    $region21: #{tpu_custom_call.1} parent=1 // pred_fallthru
      _
    %v39 = vld [vmem:[%s2] sm:$0xff]
    %v40 = vld [vmem:[%s2 + $0x8] sm:$0xff]
    %v41 = vld [vmem:[%s2 + $0x10] sm:$0xff]
    %v42 = vld [vmem:[%s2 + $0x18] sm:$0xff]
    %v43 = vld [vmem:[%s2 + $0x20] sm:$0xff]
    %v44 = vld [vmem:[%s2 + $0x28] sm:$0xff]
    %v45 = vld [vmem:[%s2 + $0x30] sm:$0xff]
    %v46 = vld [vmem:[%s2 + $0x38] sm:$0xff]
    %v47 = vld [vmem:[%s2 + $0x40] sm:$0xff]
    %v48 = vld [vmem:[%s2 + $0x48] sm:$0xff]
    %v49 = vld [vmem:[%s2 + $0x50] sm:$0xff]
    %v50 = vld [vmem:[%s2 + $0x58] sm:$0xff]
    %v51 = vld [vmem:[%s0] sm:$0xff]
    %v52 = vld [vmem:[%s0 + $0x8] sm:$0xff]
    %v53 = vld [vmem:[%s0 + $0x10] sm:$0xff]
    %v54 = vld [vmem:[%s0 + $0x18] sm:$0xff]
    %v55 = vld [vmem:[#allocation2] sm:$0xff]
    %v56 = vld [vmem:[#allocation2 + $0x8] sm:$0xff]
    %v57 = vld [vmem:[#allocation2 + $0x10] sm:$0xff]
    %v58 = vld [vmem:[#allocation2 + $0x18] sm:$0xff]
    %63 = vrot.lane.b32.xlu0 %v55, 4
    %v64 = vpop.permute.xlu0 %63
    %65 = vrot.lane.b32.xlu0 %v56, 4
    %v66 = vpop.permute.xlu0 %65
    %67 = vrot.lane.b32.xlu0 %v57, 4
    %v68 = vpop.permute.xlu0 %67
    %69 = vrot.lane.b32.xlu0 %v58, 4
    %v70 = vpop.permute.xlu0 %69
    %vm75 = vcmask 31744
    %v76 = vsel %vm75, %v51, %v64
    %v77 = vsel %vm75, %v52, %v66
    %v78 = vsel %vm75, %v53, %v68
    %v79 = vsel %vm75, %v54, %v70
    %vm80 = vcmask 261120
    %v82 = vsel %vm80, %v39, 0
    %v85 = vsel %vm80, %v40, 0
    %v88 = vsel %vm80, %v41, 0
    %v91 = vsel %vm80, %v42, 0
    %v94 = vsel %vm80, %v43, 0
    %v97 = vsel %vm80, %v44, 0
    %v100 = vsel %vm80, %v45, 0
    %v103 = vsel %vm80, %v46, 0
    %v106 = vsel %vm80, %v47, 0
    %v109 = vsel %vm80, %v48, 0
    %v112 = vsel %vm80, %v49, 0
    %v115 = vsel %vm80, %v50, 0
    %117 = vmatprep.subr.mxu0 0.0
    %118 = vmatpush1.msra.mxu0 %v76
    %119 = vmatprep.subr.mxu0 0.0
    %120 = vmatpush1.msra.mxu0 %v77
    %121 = vmatprep.subr.mxu0 0.0
    %122 = vmatpush1.msra.mxu0 %v78
    %123 = vmatprep.subr.mxu0 0.0
    %124 = vmatpush1.msra.mxu0 %v79
    %125 = vmatprep.subr.mxu0 0.0
    %126 = vmatpush1.msra.mxu0 0.0
    %127 = vmatprep.subr.mxu0 0.0
    %128 = vmatpush1.msra.mxu0 0.0
    %129 = vmatprep.subr.mxu0 0.0
    %130 = vmatpush1.msra.mxu0 0.0
    %131 = vmatprep.subr.mxu0 0.0
    %132 = vmatpush1.msra.mxu0 0.0
    %133 = vmatprep.subr.mxu0 0.0
    %134 = vmatpush1.msra.mxu0 0.0
    %135 = vmatprep.subr.mxu0 0.0
    %136 = vmatpush1.msra.mxu0 0.0
    %137 = vmatprep.subr.mxu0 0.0
    %138 = vmatpush1.msra.mxu0 0.0
    %139 = vmatprep.subr.mxu0 0.0
    %140 = vmatpush1.msra.mxu0 0.0
    %141 = vmatprep.subr.mxu0 0.0
    %142 = vmatpush1.msra.mxu0 0.0
    %143 = vmatprep.subr.mxu0 0.0
    %144 = vmatpush1.msra.mxu0 0.0
    %145 = vmatprep.subr.mxu0 0.0
    %146 = vmatpush1.msra.mxu0 0.0
    %147 = vmatprep.subr.mxu0 0.0
    %148 = vmatpush1.msra.mxu0 0.0
    %149 = vmatprep.subr.mxu0 0.0
    %150 = vmatpush1.msra.mxu0 0.0
    %151 = vmatprep.subr.mxu0 0.0
    %152 = vmatpush1.msra.mxu0 0.0
    %153 = vmatprep.subr.mxu0 0.0
    %154 = vmatpush1.msra.mxu0 0.0
    %155 = vmatprep.subr.mxu0 0.0
    %156 = vmatpush1.msra.mxu0 0.0
    %157 = vmatprep.subr.mxu0 0.0
    %158 = vmatpush1.msra.mxu0 0.0
    %159 = vmatprep.subr.mxu0 0.0
    %160 = vmatpush1.msra.mxu0 0.0
    %161 = vmatprep.subr.mxu0 0.0
    %162 = vmatpush1.msra.mxu0 0.0
    %163 = vmatprep.subr.mxu0 0.0
    %164 = vmatpush1.msra.mxu0 0.0
    %165 = vmatprep.subr.mxu0 0.0
    %166 = vmatpush1.msra.mxu0 0.0
    %167 = vmatprep.subr.mxu0 0.0
    %168 = vmatpush1.msra.mxu0 0.0
    %169 = vmatprep.subr.mxu0 0.0
    %170 = vmatpush1.msra.mxu0 0.0
    %171 = vmatprep.subr.mxu0 0.0
    %172 = vmatpush1.msra.mxu0 0.0
    %173 = vmatprep.subr.mxu0 0.0
    %174 = vmatpush1.msra.mxu0 0.0
    %175 = vmatprep.subr.mxu0 0.0
    %176 = vmatpush1.msra.mxu0 0.0
    %177 = vmatprep.subr.mxu0 0.0
    %178 = vmatpush1.msra.mxu0 0.0
    %179 = vmatprep.subr.mxu0 0.0
    %180 = vmatpush1.msra.mxu0 0.0
    %181 = vmatprep.mubr.f32.mxu0 0.0
    %182 = vmatmul.mubr.f32.gmra.mrb[0].mxu0 %v82
    %v183 = vpop.f32.mrb[0].mxu0
    %v184 = vadd.f32 0.0, %v183
    %v185 = vpop.f32.mrb[0].mxu0
    %186 = vmatprep.mubr.f32.mxu0 0.0
    %187 = vmatmul.mubr.f32.gmra.mrb[0].mxu0 %v85
    %v188 = vpop.f32.mrb[0].mxu0
    %v189 = vadd.f32 0.0, %v188
    %v190 = vpop.f32.mrb[0].mxu0
    %191 = vmatprep.mubr.f32.mxu0 0.0
    %192 = vmatmul.mubr.f32.gmra.mrb[0].mxu0 %v88
    %v193 = vpop.f32.mrb[0].mxu0
    %v194 = vadd.f32 0.0, %v193
    %v195 = vpop.f32.mrb[0].mxu0
    %196 = vmatprep.mubr.f32.mxu0 0.0
    %197 = vmatmul.mubr.f32.gmra.mrb[0].mxu0 %v91
    %v198 = vpop.f32.mrb[0].mxu0
    %v199 = vadd.f32 0.0, %v198
    %v200 = vpop.f32.mrb[0].mxu0
    %201 = vmatprep.mubr.f32.mxu0 0.0
    %202 = vmatmul.mubr.f32.gmra.mrb[0].mxu0 %v94
    %v203 = vpop.f32.mrb[0].mxu0
    %v204 = vadd.f32 0.0, %v203
    %v205 = vpop.f32.mrb[0].mxu0
    %206 = vmatprep.mubr.f32.mxu0 0.0
    %207 = vmatmul.mubr.f32.gmra.mrb[0].mxu0 %v97
    %v208 = vpop.f32.mrb[0].mxu0
    %v209 = vadd.f32 0.0, %v208
    %v210 = vpop.f32.mrb[0].mxu0
    %211 = vmatprep.mubr.f32.mxu0 0.0
    %212 = vmatmul.mubr.f32.gmra.mrb[0].mxu0 %v100
    %v213 = vpop.f32.mrb[0].mxu0
    %v214 = vadd.f32 0.0, %v213
    %v215 = vpop.f32.mrb[0].mxu0
    %216 = vmatprep.mubr.f32.mxu0 0.0
    %217 = vmatmul.mubr.f32.gmra.mrb[0].mxu0 %v103
    %v218 = vpop.f32.mrb[0].mxu0
    %v219 = vadd.f32 0.0, %v218
    %v220 = vpop.f32.mrb[0].mxu0
    %221 = vmatprep.mubr.f32.mxu0 0.0
    %222 = vmatmul.mubr.f32.gmra.mrb[0].mxu0 %v106
    %v223 = vpop.f32.mrb[0].mxu0
    %v224 = vadd.f32 0.0, %v223
    %v225 = vpop.f32.mrb[0].mxu0
    %226 = vmatprep.mubr.f32.mxu0 0.0
    %227 = vmatmul.mubr.f32.gmra.mrb[0].mxu0 %v109
    %v228 = vpop.f32.mrb[0].mxu0
    %v229 = vadd.f32 0.0, %v228
    %v230 = vpop.f32.mrb[0].mxu0
    %231 = vmatprep.mubr.f32.mxu0 0.0
    %232 = vmatmul.mubr.f32.gmra.mrb[0].mxu0 %v112
    %v233 = vpop.f32.mrb[0].mxu0
    %v234 = vadd.f32 0.0, %v233
    %v235 = vpop.f32.mrb[0].mxu0
    %236 = vmatprep.mubr.f32.mxu0 0.0
    %237 = vmatmul.mubr.f32.gmra.mrb[0].mxu0 %v115
    %v238 = vpop.f32.mrb[0].mxu0
    %v239 = vadd.f32 0.0, %v238
    %v240 = vpop.f32.mrb[0].mxu0
    %241 = vdwg.mxu0
    %246 = vrot.lane.b32.xlu0 %v204, 36
    %v247 = vpop.permute.xlu0 %246
    %248 = vrot.lane.b32.xlu0 %v209, 36
    %v249 = vpop.permute.xlu0 %248
    %250 = vrot.lane.b32.xlu0 %v214, 36
    %v251 = vpop.permute.xlu0 %250
    %252 = vrot.lane.b32.xlu0 %v219, 36
    %v253 = vpop.permute.xlu0 %252
    %262 = vrot.lane.b32.xlu0 %v224, 72
    %v263 = vpop.permute.xlu0 %262
    %264 = vrot.lane.b32.xlu0 %v229, 72
    %v265 = vpop.permute.xlu0 %264
    %266 = vrot.lane.b32.xlu0 %v234, 72
    %v267 = vpop.permute.xlu0 %266
    %268 = vrot.lane.b32.xlu0 %v239, 72
    %v269 = vpop.permute.xlu0 %268
    %vm274 = vcmask 293888
    %v275 = vsel %vm274, %v184, %v247
    %v276 = vsel %vm274, %v189, %v249
    %v277 = vsel %vm274, %v194, %v251
    %v278 = vsel %vm274, %v199, %v253
    %vm279 = vcmask 588800
    %v280 = vsel %vm279, %v275, %v263
    %v281 = vsel %vm279, %v276, %v265
    %v282 = vsel %vm279, %v277, %v267
    %v283 = vsel %vm279, %v278, %v269
    %v284 = vld [vmem:[%s3] sm:$0xff]
    %v285 = vld [vmem:[%s3 + $0x8] sm:$0xff]
    %v286 = vld [vmem:[%s3 + $0x10] sm:$0xff]
    %v287 = vld [vmem:[%s3 + $0x18] sm:$0xff]
    %v288 = vld [vmem:[%s3 + $0x20] sm:$0xff]
    %v289 = vld [vmem:[%s3 + $0x28] sm:$0xff]
    %v290 = vld [vmem:[%s3 + $0x30] sm:$0xff]
    %v291 = vld [vmem:[%s3 + $0x38] sm:$0xff]
    %v292 = vld [vmem:[%s3 + $0x40] sm:$0xff]
    %v293 = vld [vmem:[%s3 + $0x48] sm:$0xff]
    %v294 = vld [vmem:[%s3 + $0x50] sm:$0xff]
    %v295 = vld [vmem:[%s3 + $0x58] sm:$0xff]
    %v296 = vld [vmem:[%s3 + $0x60] sm:$0xff]
    %v297 = vld [vmem:[%s3 + $0x68] sm:$0xf]
    %v298 = vld [vmem:[%s3 + $0xd0] sm:$0x1]
    %v299 = vlaneseq
    %v300 = vshrl.u32 %v299, 7
    %v301 = vsub.s32 0, %v300
    %v302 = vrot.slane %v298, %v301
    %vm303 = vcmask 883712
    %v305 = vsel %vm303, %v280, 0
    %v308 = vsel %vm303, %v281, 0
    %v311 = vsel %vm303, %v282, 0
    %v314 = vsel %vm303, %v283, 0
    %vm316 = vcmask 1043456
    %v318 = vsel %vm316, %v297, 0
    %320 = vmatprep.subr.mxu0 0.0
    %321 = vmatpush1.msra.mxu0 %v284
    %322 = vmatprep.subr.mxu0 0.0
    %323 = vmatpush1.msra.mxu0 %v285
    %324 = vmatprep.subr.mxu0 0.0
    %325 = vmatpush1.msra.mxu0 %v286
    %326 = vmatprep.subr.mxu0 0.0
    %327 = vmatpush1.msra.mxu0 %v287
    %328 = vmatprep.subr.mxu0 0.0
    %329 = vmatpush1.msra.mxu0 %v288
    %330 = vmatprep.subr.mxu0 0.0
    %331 = vmatpush1.msra.mxu0 %v289
    %332 = vmatprep.subr.mxu0 0.0
    %333 = vmatpush1.msra.mxu0 %v290
    %334 = vmatprep.subr.mxu0 0.0
    %335 = vmatpush1.msra.mxu0 %v291
    %336 = vmatprep.subr.mxu0 0.0
    %337 = vmatpush1.msra.mxu0 %v292
    %338 = vmatprep.subr.mxu0 0.0
    %339 = vmatpush1.msra.mxu0 %v293
    %340 = vmatprep.subr.mxu0 0.0
    %341 = vmatpush1.msra.mxu0 %v294
    %342 = vmatprep.subr.mxu0 0.0
    %343 = vmatpush1.msra.mxu0 %v295
    %344 = vmatprep.subr.mxu0 0.0
    %345 = vmatpush1.msra.mxu0 %v296
    %346 = vmatprep.subr.mxu0 0.0
    %347 = vmatpush1.msra.mxu0 %v318
    %348 = vmatprep.subr.mxu0 0.0
    %349 = vmatpush1.msra.mxu0 0.0
    %350 = vmatprep.subr.mxu0 0.0
    %351 = vmatpush1.msra.mxu0 0.0
    %352 = vmatprep.subr.mxu0 0.0
    %353 = vmatpush1.msra.mxu0 0.0
    %354 = vmatprep.subr.mxu0 0.0
    %355 = vmatpush1.msra.mxu0 0.0
    %356 = vmatprep.subr.mxu0 0.0
    %357 = vmatpush1.msra.mxu0 0.0
    %358 = vmatprep.subr.mxu0 0.0
    %359 = vmatpush1.msra.mxu0 0.0
    %360 = vmatprep.subr.mxu0 0.0
    %361 = vmatpush1.msra.mxu0 0.0
    %362 = vmatprep.subr.mxu0 0.0
    %363 = vmatpush1.msra.mxu0 0.0
    %364 = vmatprep.subr.mxu0 0.0
    %365 = vmatpush1.msra.mxu0 0.0
    %366 = vmatprep.subr.mxu0 0.0
    %367 = vmatpush1.msra.mxu0 0.0
    %368 = vmatprep.subr.mxu0 0.0
    %369 = vmatpush1.msra.mxu0 0.0
    %370 = vmatprep.subr.mxu0 0.0
    %371 = vmatpush1.msra.mxu0 0.0
    %372 = vmatprep.subr.mxu0 0.0
    %373 = vmatpush1.msra.mxu0 0.0
    %374 = vmatprep.subr.mxu0 0.0
    %375 = vmatpush1.msra.mxu0 0.0
    %376 = vmatprep.subr.mxu0 0.0
    %377 = vmatpush1.msra.mxu0 0.0
    %378 = vmatprep.subr.mxu0 0.0
    %379 = vmatpush1.msra.mxu0 0.0
    %380 = vmatprep.subr.mxu0 0.0
    %381 = vmatpush1.msra.mxu0 0.0
    %382 = vmatprep.subr.mxu0 0.0
    %383 = vmatpush1.msra.mxu0 0.0
    %384 = vmatprep.mubr.f32.mxu0 0.0
    %385 = vmatmul.mubr.f32.gmra.mrb[0].mxu0 %v305
    %v386 = vpop.f32.mrb[0].mxu0
    %v387 = vadd.f32 %v302, %v386
    %v388 = vpop.f32.mrb[0].mxu0
    %389 = vmatprep.mubr.f32.mxu0 0.0
    %390 = vmatmul.mubr.f32.gmra.mrb[0].mxu0 %v308
    %v391 = vpop.f32.mrb[0].mxu0
    %v392 = vadd.f32 %v302, %v391
    %v393 = vpop.f32.mrb[0].mxu0
    %394 = vmatprep.mubr.f32.mxu0 0.0
    %395 = vmatmul.mubr.f32.gmra.mrb[0].mxu0 %v311
    %v396 = vpop.f32.mrb[0].mxu0
    %v397 = vadd.f32 %v302, %v396
    %v398 = vpop.f32.mrb[0].mxu0
    %399 = vmatprep.mubr.f32.mxu0 0.0
    %400 = vmatmul.mubr.f32.gmra.mrb[0].mxu0 %v314
    %v401 = vpop.f32.mrb[0].mxu0
    %v402 = vadd.f32 %v302, %v401
    %v403 = vpop.f32.mrb[0].mxu0
    %404 = vdwg.mxu0
    %v405 = vxor.u32 %v387, 2147483648
    %v406 = vxor.u32 %v392, 2147483648
    %v407 = vxor.u32 %v397, 2147483648
    %v408 = vxor.u32 %v402, 2147483648
    %v409 = vmul.f32 %v405, 1.442695
    %v410 = vpow.pop %v409
    %v411 = vmul.f32 %v406, 1.442695
    %v412 = vpow.pop %v411
    %v413 = vmul.f32 %v407, 1.442695
    %v414 = vpow.pop %v413
    %v415 = vmul.f32 %v408, 1.442695
    %v416 = vpow.pop %v415
    %v417 = vadd.f32 %v410, 1.0
    %v418 = vadd.f32 %v412, 1.0
    %v419 = vadd.f32 %v414, 1.0
    %v420 = vadd.f32 %v416, 1.0
    %v421 = vrcp.pop %v417
    %v422 = vmul.f32 1.0, %v421
    %v423 = vrcp.pop %v418
    %v424 = vmul.f32 1.0, %v423
    %v425 = vrcp.pop %v419
    %v426 = vmul.f32 1.0, %v425
    %v427 = vrcp.pop %v420
    %v428 = vmul.f32 1.0, %v427
    %v429 = vmul.f32 %v422, %v55
    %v430 = vmul.f32 %v424, %v56
    %v431 = vmul.f32 %v426, %v57
    %v432 = vmul.f32 %v428, %v58
    %433 = vmatprep.subr.mxu0 0.0
    %434 = vmatpush1.msra.mxu0 %v429
    %435 = vmatprep.subr.mxu0 0.0
    %436 = vmatpush1.msra.mxu0 %v430
    %437 = vmatprep.subr.mxu0 0.0
    %438 = vmatpush1.msra.mxu0 %v431
    %439 = vmatprep.subr.mxu0 0.0
    %440 = vmatpush1.msra.mxu0 %v432
    %441 = vmatprep.subr.mxu0 0.0
    %442 = vmatpush1.msra.mxu0 0.0
    %443 = vmatprep.subr.mxu0 0.0
    %444 = vmatpush1.msra.mxu0 0.0
    %445 = vmatprep.subr.mxu0 0.0
    %446 = vmatpush1.msra.mxu0 0.0
    %447 = vmatprep.subr.mxu0 0.0
    %448 = vmatpush1.msra.mxu0 0.0
    %449 = vmatprep.subr.mxu0 0.0
    %450 = vmatpush1.msra.mxu0 0.0
    %451 = vmatprep.subr.mxu0 0.0
    %452 = vmatpush1.msra.mxu0 0.0
    %453 = vmatprep.subr.mxu0 0.0
    %454 = vmatpush1.msra.mxu0 0.0
    %455 = vmatprep.subr.mxu0 0.0
    %456 = vmatpush1.msra.mxu0 0.0
    %457 = vmatprep.subr.mxu0 0.0
    %458 = vmatpush1.msra.mxu0 0.0
    %459 = vmatprep.subr.mxu0 0.0
    %460 = vmatpush1.msra.mxu0 0.0
    %461 = vmatprep.subr.mxu0 0.0
    %462 = vmatpush1.msra.mxu0 0.0
    %463 = vmatprep.subr.mxu0 0.0
    %464 = vmatpush1.msra.mxu0 0.0
    %465 = vmatprep.subr.mxu0 0.0
    %466 = vmatpush1.msra.mxu0 0.0
    %467 = vmatprep.subr.mxu0 0.0
    %468 = vmatpush1.msra.mxu0 0.0
    %469 = vmatprep.subr.mxu0 0.0
    %470 = vmatpush1.msra.mxu0 0.0
    %471 = vmatprep.subr.mxu0 0.0
    %472 = vmatpush1.msra.mxu0 0.0
    %473 = vmatprep.subr.mxu0 0.0
    %474 = vmatpush1.msra.mxu0 0.0
    %475 = vmatprep.subr.mxu0 0.0
    %476 = vmatpush1.msra.mxu0 0.0
    %477 = vmatprep.subr.mxu0 0.0
    %478 = vmatpush1.msra.mxu0 0.0
    %479 = vmatprep.subr.mxu0 0.0
    %480 = vmatpush1.msra.mxu0 0.0
    %481 = vmatprep.subr.mxu0 0.0
    %482 = vmatpush1.msra.mxu0 0.0
    %483 = vmatprep.subr.mxu0 0.0
    %484 = vmatpush1.msra.mxu0 0.0
    %485 = vmatprep.subr.mxu0 0.0
    %486 = vmatpush1.msra.mxu0 0.0
    %487 = vmatprep.subr.mxu0 0.0
    %488 = vmatpush1.msra.mxu0 0.0
    %489 = vmatprep.subr.mxu0 0.0
    %490 = vmatpush1.msra.mxu0 0.0
    %491 = vmatprep.subr.mxu0 0.0
    %492 = vmatpush1.msra.mxu0 0.0
    %493 = vmatprep.subr.mxu0 0.0
    %494 = vmatpush1.msra.mxu0 0.0
    %495 = vmatprep.subr.mxu0 0.0
    %496 = vmatpush1.msra.mxu0 0.0
    %497 = vmatprep.mubr.f32.mxu0 0.0
    %498 = vmatmul.mubr.f32.gmra.mrb[0].mxu0 %v82
    %v499 = vpop.f32.mrb[0].mxu0
    %v500 = vadd.f32 0.0, %v499
    %v501 = vpop.f32.mrb[0].mxu0
    %502 = vmatprep.mubr.f32.mxu0 0.0
    %503 = vmatmul.mubr.f32.gmra.mrb[0].mxu0 %v85
    %v504 = vpop.f32.mrb[0].mxu0
    %v505 = vadd.f32 0.0, %v504
    %v506 = vpop.f32.mrb[0].mxu0
    %507 = vmatprep.mubr.f32.mxu0 0.0
    %508 = vmatmul.mubr.f32.gmra.mrb[0].mxu0 %v88
    %v509 = vpop.f32.mrb[0].mxu0
    %v510 = vadd.f32 0.0, %v509
    %v511 = vpop.f32.mrb[0].mxu0
    %512 = vmatprep.mubr.f32.mxu0 0.0
    %513 = vmatmul.mubr.f32.gmra.mrb[0].mxu0 %v91
    %v514 = vpop.f32.mrb[0].mxu0
    %v515 = vadd.f32 0.0, %v514
    %v516 = vpop.f32.mrb[0].mxu0
    %517 = vmatprep.mubr.f32.mxu0 0.0
    %518 = vmatmul.mubr.f32.gmra.mrb[0].mxu0 %v94
    %v519 = vpop.f32.mrb[0].mxu0
    %v520 = vadd.f32 0.0, %v519
    %v521 = vpop.f32.mrb[0].mxu0
    %522 = vmatprep.mubr.f32.mxu0 0.0
    %523 = vmatmul.mubr.f32.gmra.mrb[0].mxu0 %v97
    %v524 = vpop.f32.mrb[0].mxu0
    %v525 = vadd.f32 0.0, %v524
    %v526 = vpop.f32.mrb[0].mxu0
    %527 = vmatprep.mubr.f32.mxu0 0.0
    %528 = vmatmul.mubr.f32.gmra.mrb[0].mxu0 %v100
    %v529 = vpop.f32.mrb[0].mxu0
    %v530 = vadd.f32 0.0, %v529
    %v531 = vpop.f32.mrb[0].mxu0
    %532 = vmatprep.mubr.f32.mxu0 0.0
    %533 = vmatmul.mubr.f32.gmra.mrb[0].mxu0 %v103
    %v534 = vpop.f32.mrb[0].mxu0
    %v535 = vadd.f32 0.0, %v534
    %v536 = vpop.f32.mrb[0].mxu0
    %537 = vmatprep.mubr.f32.mxu0 0.0
    %538 = vmatmul.mubr.f32.gmra.mrb[0].mxu0 %v106
    %v539 = vpop.f32.mrb[0].mxu0
    %v540 = vadd.f32 0.0, %v539
    %v541 = vpop.f32.mrb[0].mxu0
    %542 = vmatprep.mubr.f32.mxu0 0.0
    %543 = vmatmul.mubr.f32.gmra.mrb[0].mxu0 %v109
    %v544 = vpop.f32.mrb[0].mxu0
    %v545 = vadd.f32 0.0, %v544
    %v546 = vpop.f32.mrb[0].mxu0
    %547 = vmatprep.mubr.f32.mxu0 0.0
    %548 = vmatmul.mubr.f32.gmra.mrb[0].mxu0 %v112
    %v549 = vpop.f32.mrb[0].mxu0
    %v550 = vadd.f32 0.0, %v549
    %v551 = vpop.f32.mrb[0].mxu0
    %552 = vmatprep.mubr.f32.mxu0 0.0
    %553 = vmatmul.mubr.f32.gmra.mrb[0].mxu0 %v115
    %v554 = vpop.f32.mrb[0].mxu0
    %v555 = vadd.f32 0.0, %v554
    %v556 = vpop.f32.mrb[0].mxu0
    %557 = vdwg.mxu0
    %562 = vrot.lane.b32.xlu0 %v520, 32
    %v563 = vpop.permute.xlu0 %562
    %564 = vrot.lane.b32.xlu0 %v525, 32
    %v565 = vpop.permute.xlu0 %564
    %566 = vrot.lane.b32.xlu0 %v530, 32
    %v567 = vpop.permute.xlu0 %566
    %568 = vrot.lane.b32.xlu0 %v535, 32
    %v569 = vpop.permute.xlu0 %568
    %578 = vrot.lane.b32.xlu0 %v540, 64
    %v579 = vpop.permute.xlu0 %578
    %580 = vrot.lane.b32.xlu0 %v545, 64
    %v581 = vpop.permute.xlu0 %580
    %582 = vrot.lane.b32.xlu0 %v550, 64
    %v583 = vpop.permute.xlu0 %582
    %584 = vrot.lane.b32.xlu0 %v555, 64
    %v585 = vpop.permute.xlu0 %584
    %v590 = vsel %vm80, %v500, %v563
    %v591 = vsel %vm80, %v505, %v565
    %v592 = vsel %vm80, %v510, %v567
    %v593 = vsel %vm80, %v515, %v569
    %vm594 = vcmask 523264
    %v595 = vsel %vm594, %v590, %v579
    %v596 = vsel %vm594, %v591, %v581
    %v597 = vsel %vm594, %v592, %v583
    %v598 = vsel %vm594, %v593, %v585
    %v599 = vld [vmem:[%s3 + $0x70] sm:$0xff]
    %v600 = vld [vmem:[%s3 + $0x78] sm:$0xff]
    %v601 = vld [vmem:[%s3 + $0x80] sm:$0xff]
    %v602 = vld [vmem:[%s3 + $0x88] sm:$0xff]
    %v603 = vld [vmem:[%s3 + $0x90] sm:$0xff]
    %v604 = vld [vmem:[%s3 + $0x98] sm:$0xff]
    %v605 = vld [vmem:[%s3 + $0xa0] sm:$0xff]
    %v606 = vld [vmem:[%s3 + $0xa8] sm:$0xff]
    %v607 = vld [vmem:[%s3 + $0xb0] sm:$0xff]
    %v608 = vld [vmem:[%s3 + $0xb8] sm:$0xff]
    %v609 = vld [vmem:[%s3 + $0xc0] sm:$0xff]
    %v610 = vld [vmem:[%s3 + $0xc8] sm:$0xff]
    %vm611 = vcmask 785408
    %v613 = vsel %vm611, %v595, 0
    %v616 = vsel %vm611, %v596, 0
    %v619 = vsel %vm611, %v597, 0
    %v622 = vsel %vm611, %v598, 0
    %624 = vmatprep.subr.mxu0 0.0
    %625 = vmatpush1.msra.mxu0 %v599
    %626 = vmatprep.subr.mxu0 0.0
    %627 = vmatpush1.msra.mxu0 %v600
    %628 = vmatprep.subr.mxu0 0.0
    %629 = vmatpush1.msra.mxu0 %v601
    %630 = vmatprep.subr.mxu0 0.0
    %631 = vmatpush1.msra.mxu0 %v602
    %632 = vmatprep.subr.mxu0 0.0
    %633 = vmatpush1.msra.mxu0 %v603
    %634 = vmatprep.subr.mxu0 0.0
    %635 = vmatpush1.msra.mxu0 %v604
    %636 = vmatprep.subr.mxu0 0.0
    %637 = vmatpush1.msra.mxu0 %v605
    %638 = vmatprep.subr.mxu0 0.0
    %639 = vmatpush1.msra.mxu0 %v606
    %640 = vmatprep.subr.mxu0 0.0
    %641 = vmatpush1.msra.mxu0 %v607
    %642 = vmatprep.subr.mxu0 0.0
    %643 = vmatpush1.msra.mxu0 %v608
    %644 = vmatprep.subr.mxu0 0.0
    %645 = vmatpush1.msra.mxu0 %v609
    %646 = vmatprep.subr.mxu0 0.0
    %647 = vmatpush1.msra.mxu0 %v610
    %648 = vmatprep.subr.mxu0 0.0
    %649 = vmatpush1.msra.mxu0 0.0
    %650 = vmatprep.subr.mxu0 0.0
    %651 = vmatpush1.msra.mxu0 0.0
    %652 = vmatprep.subr.mxu0 0.0
    %653 = vmatpush1.msra.mxu0 0.0
    %654 = vmatprep.subr.mxu0 0.0
    %655 = vmatpush1.msra.mxu0 0.0
    %656 = vmatprep.subr.mxu0 0.0
    %657 = vmatpush1.msra.mxu0 0.0
    %658 = vmatprep.subr.mxu0 0.0
    %659 = vmatpush1.msra.mxu0 0.0
    %660 = vmatprep.subr.mxu0 0.0
    %661 = vmatpush1.msra.mxu0 0.0
    %662 = vmatprep.subr.mxu0 0.0
    %663 = vmatpush1.msra.mxu0 0.0
    %664 = vmatprep.subr.mxu0 0.0
    %665 = vmatpush1.msra.mxu0 0.0
    %666 = vmatprep.subr.mxu0 0.0
    %667 = vmatpush1.msra.mxu0 0.0
    %668 = vmatprep.subr.mxu0 0.0
    %669 = vmatpush1.msra.mxu0 0.0
    %670 = vmatprep.subr.mxu0 0.0
    %671 = vmatpush1.msra.mxu0 0.0
    %672 = vmatprep.subr.mxu0 0.0
    %673 = vmatpush1.msra.mxu0 0.0
    %674 = vmatprep.subr.mxu0 0.0
    %675 = vmatpush1.msra.mxu0 0.0
    %676 = vmatprep.subr.mxu0 0.0
    %677 = vmatpush1.msra.mxu0 0.0
    %678 = vmatprep.subr.mxu0 0.0
    %679 = vmatpush1.msra.mxu0 0.0
    %680 = vmatprep.subr.mxu0 0.0
    %681 = vmatpush1.msra.mxu0 0.0
    %682 = vmatprep.subr.mxu0 0.0
    %683 = vmatpush1.msra.mxu0 0.0
    %684 = vmatprep.subr.mxu0 0.0
    %685 = vmatpush1.msra.mxu0 0.0
    %686 = vmatprep.subr.mxu0 0.0
    %687 = vmatpush1.msra.mxu0 0.0
    %688 = vmatprep.mubr.f32.mxu0 0.0
    %689 = vmatmul.mubr.f32.gmra.mrb[0].mxu0 %v613
    %v690 = vpop.f32.mrb[0].mxu0
    %v691 = vadd.f32 0.0, %v690
    %v692 = vpop.f32.mrb[0].mxu0
    %693 = vmatprep.mubr.f32.mxu0 0.0
    %694 = vmatmul.mubr.f32.gmra.mrb[0].mxu0 %v616
    %v695 = vpop.f32.mrb[0].mxu0
    %v696 = vadd.f32 0.0, %v695
    %v697 = vpop.f32.mrb[0].mxu0
    %698 = vmatprep.mubr.f32.mxu0 0.0
    %699 = vmatmul.mubr.f32.gmra.mrb[0].mxu0 %v619
    %v700 = vpop.f32.mrb[0].mxu0
    %v701 = vadd.f32 0.0, %v700
    %v702 = vpop.f32.mrb[0].mxu0
    %703 = vmatprep.mubr.f32.mxu0 0.0
    %704 = vmatmul.mubr.f32.gmra.mrb[0].mxu0 %v622
    %v705 = vpop.f32.mrb[0].mxu0
    %v706 = vadd.f32 0.0, %v705
    %v707 = vpop.f32.mrb[0].mxu0
    %708 = vdwg.mxu0
    %713 = vrot.lane.b32.xlu0 %v691, 64
    %v714 = vpop.permute.xlu0 %713
    %715 = vrot.lane.b32.xlu0 %v696, 64
    %v716 = vpop.permute.xlu0 %715
    %717 = vrot.lane.b32.xlu0 %v701, 64
    %v718 = vpop.permute.xlu0 %717
    %719 = vrot.lane.b32.xlu0 %v706, 64
    %v720 = vpop.permute.xlu0 %719
    %v725 = vadd.f32 %v387, %v714
    %v726 = vadd.f32 %v392, %v716
    %v727 = vadd.f32 %v397, %v718
    %v728 = vadd.f32 %v402, %v720
    %v729 = vtanh.pop %v725
    %v730 = vtanh.pop %v726
    %v731 = vtanh.pop %v727
    %v732 = vtanh.pop %v728
    %733 = vrot.lane.b32.xlu0 %v55, 32
    %v734 = vpop.permute.xlu0 %733
    %735 = vrot.lane.b32.xlu0 %v56, 32
    %v736 = vpop.permute.xlu0 %735
    %737 = vrot.lane.b32.xlu0 %v57, 32
    %v738 = vpop.permute.xlu0 %737
    %739 = vrot.lane.b32.xlu0 %v58, 32
    %v740 = vpop.permute.xlu0 %739
    %v745 = vmul.f32 %v422, %v734
    %v746 = vmul.f32 %v424, %v736
    %v747 = vmul.f32 %v426, %v738
    %v748 = vmul.f32 %v428, %v740
    %v749 = vsub.f32 1.0, %v422
    %v750 = vsub.f32 1.0, %v424
    %v751 = vsub.f32 1.0, %v426
    %v752 = vsub.f32 1.0, %v428
    %757 = vrot.lane.b32.xlu0 %v729, 96
    %v758 = vpop.permute.xlu0 %757
    %759 = vrot.lane.b32.xlu0 %v730, 96
    %v760 = vpop.permute.xlu0 %759
    %761 = vrot.lane.b32.xlu0 %v731, 96
    %v762 = vpop.permute.xlu0 %761
    %763 = vrot.lane.b32.xlu0 %v732, 96
    %v764 = vpop.permute.xlu0 %763
    %v769 = vmul.f32 %v749, %v758
    %v770 = vmul.f32 %v750, %v760
    %v771 = vmul.f32 %v751, %v762
    %v772 = vmul.f32 %v752, %v764
    %v773 = vadd.f32 %v745, %v769
    %v774 = vadd.f32 %v746, %v770
    %v775 = vadd.f32 %v747, %v771
    %v776 = vadd.f32 %v748, %v772
    %781 = vrot.lane.b32.xlu0 %v773, 96
    %v782 = vpop.permute.xlu0 %781
    %783 = vrot.lane.b32.xlu0 %v774, 96
    %v784 = vpop.permute.xlu0 %783
    %785 = vrot.lane.b32.xlu0 %v775, 96
    %v786 = vpop.permute.xlu0 %785
    %787 = vrot.lane.b32.xlu0 %v776, 96
    %v788 = vpop.permute.xlu0 %787
    %793 = vst.msk [vmem:[#allocation2] sm:$0xff] %vm80, %v782
    %794 = vst.msk [vmem:[#allocation2 + $0x8] sm:$0xff] %vm80, %v784
    %795 = vst.msk [vmem:[#allocation2 + $0x10] sm:$0xff] %vm80, %v786
    %796 = vst.msk [vmem:[#allocation2 + $0x18] sm:$0xff] %vm80, %v788
    %797 = vst.msk [vmem:[#allocation3] sm:$0xff] %vm80, %v782
    %798 = vst.msk [vmem:[#allocation3 + $0x8] sm:$0xff] %vm80, %v784
    %799 = vst.msk [vmem:[#allocation3 + $0x10] sm:$0xff] %vm80, %v786
    %800 = vst.msk [vmem:[#allocation3 + $0x18] sm:$0xff] %vm80, %v788
    %s801 = scalar_lea.vmem [#allocation2], 32
    %v802 = vld [vmem:[%s801] sm:$0xff]
    %v803 = vld [vmem:[%s801 + $0x8] sm:$0xff]
    %v804 = vld [vmem:[%s801 + $0x10] sm:$0xff]
    %v805 = vld [vmem:[%s801 + $0x18] sm:$0xff]
    %810 = vrot.lane.b32.xlu0 %v802, 32
    %v811 = vpop.permute.xlu0 %810
    %812 = vrot.lane.b32.xlu0 %v803, 32
    %v813 = vpop.permute.xlu0 %812
    %814 = vrot.lane.b32.xlu0 %v804, 32
    %v815 = vpop.permute.xlu0 %814
    %816 = vrot.lane.b32.xlu0 %v805, 32
    %v817 = vpop.permute.xlu0 %816
    %v822 = vsel %vm80, %v782, %v811
    %v823 = vsel %vm80, %v784, %v813
    %v824 = vsel %vm80, %v786, %v815
    %v825 = vsel %vm80, %v788, %v817
    %826 = vmatprep.subr.mxu0 0.0
    %827 = vmatpush1.msra.mxu0 %v822
    %828 = vmatprep.subr.mxu0 0.0
    %829 = vmatpush1.msra.mxu0 %v823
    %830 = vmatprep.subr.mxu0 0.0
    %831 = vmatpush1.msra.mxu0 %v824
    %832 = vmatprep.subr.mxu0 0.0
    %833 = vmatpush1.msra.mxu0 %v825
    %834 = vmatprep.subr.mxu0 0.0
    %835 = vmatpush1.msra.mxu0 0.0
    %836 = vmatprep.subr.mxu0 0.0
    %837 = vmatpush1.msra.mxu0 0.0
    %838 = vmatprep.subr.mxu0 0.0
    %839 = vmatpush1.msra.mxu0 0.0
    %840 = vmatprep.subr.mxu0 0.0
    %841 = vmatpush1.msra.mxu0 0.0
    %842 = vmatprep.subr.mxu0 0.0
    %843 = vmatpush1.msra.mxu0 0.0
    %844 = vmatprep.subr.mxu0 0.0
    %845 = vmatpush1.msra.mxu0 0.0
    %846 = vmatprep.subr.mxu0 0.0
    %847 = vmatpush1.msra.mxu0 0.0
    %848 = vmatprep.subr.mxu0 0.0
    %849 = vmatpush1.msra.mxu0 0.0
    %850 = vmatprep.subr.mxu0 0.0
    %851 = vmatpush1.msra.mxu0 0.0
    %852 = vmatprep.subr.mxu0 0.0
    %853 = vmatpush1.msra.mxu0 0.0
    %854 = vmatprep.subr.mxu0 0.0
    %855 = vmatpush1.msra.mxu0 0.0
    %856 = vmatprep.subr.mxu0 0.0
    %857 = vmatpush1.msra.mxu0 0.0
    %858 = vmatprep.subr.mxu0 0.0
    %859 = vmatpush1.msra.mxu0 0.0
    %860 = vmatprep.subr.mxu0 0.0
    %861 = vmatpush1.msra.mxu0 0.0
    %862 = vmatprep.subr.mxu0 0.0
    %863 = vmatpush1.msra.mxu0 0.0
    %864 = vmatprep.subr.mxu0 0.0
    %865 = vmatpush1.msra.mxu0 0.0
    %866 = vmatprep.subr.mxu0 0.0
    %867 = vmatpush1.msra.mxu0 0.0
    %868 = vmatprep.subr.mxu0 0.0
    %869 = vmatpush1.msra.mxu0 0.0
    %870 = vmatprep.subr.mxu0 0.0
    %871 = vmatpush1.msra.mxu0 0.0
    %872 = vmatprep.subr.mxu0 0.0
    %873 = vmatpush1.msra.mxu0 0.0
    %874 = vmatprep.subr.mxu0 0.0
    %875 = vmatpush1.msra.mxu0 0.0
    %876 = vmatprep.subr.mxu0 0.0
    %877 = vmatpush1.msra.mxu0 0.0
    %878 = vmatprep.subr.mxu0 0.0
    %879 = vmatpush1.msra.mxu0 0.0
    %880 = vmatprep.subr.mxu0 0.0
    %881 = vmatpush1.msra.mxu0 0.0
    %882 = vmatprep.subr.mxu0 0.0
    %883 = vmatpush1.msra.mxu0 0.0
    %884 = vmatprep.subr.mxu0 0.0
    %885 = vmatpush1.msra.mxu0 0.0
    %886 = vmatprep.subr.mxu0 0.0
    %887 = vmatpush1.msra.mxu0 0.0
    %888 = vmatprep.subr.mxu0 0.0
    %889 = vmatpush1.msra.mxu0 0.0
    %890 = vmatprep.mubr.f32.mxu0 0.0
    %891 = vmatmul.mubr.f32.gmra.mrb[0].mxu0 %v82
    %v892 = vpop.f32.mrb[0].mxu0
    %v893 = vadd.f32 0.0, %v892
    %v894 = vpop.f32.mrb[0].mxu0
    %895 = vmatprep.mubr.f32.mxu0 0.0
    %896 = vmatmul.mubr.f32.gmra.mrb[0].mxu0 %v85
    %v897 = vpop.f32.mrb[0].mxu0
    %v898 = vadd.f32 0.0, %v897
    %v899 = vpop.f32.mrb[0].mxu0
    %900 = vmatprep.mubr.f32.mxu0 0.0
    %901 = vmatmul.mubr.f32.gmra.mrb[0].mxu0 %v88
    %v902 = vpop.f32.mrb[0].mxu0
    %v903 = vadd.f32 0.0, %v902
    %v904 = vpop.f32.mrb[0].mxu0
    %905 = vmatprep.mubr.f32.mxu0 0.0
    %906 = vmatmul.mubr.f32.gmra.mrb[0].mxu0 %v91
    %v907 = vpop.f32.mrb[0].mxu0
    %v908 = vadd.f32 0.0, %v907
    %v909 = vpop.f32.mrb[0].mxu0
    %910 = vmatprep.mubr.f32.mxu0 0.0
    %911 = vmatmul.mubr.f32.gmra.mrb[0].mxu0 %v94
    %v912 = vpop.f32.mrb[0].mxu0
    %v913 = vadd.f32 0.0, %v912
    %v914 = vpop.f32.mrb[0].mxu0
    %915 = vmatprep.mubr.f32.mxu0 0.0
    %916 = vmatmul.mubr.f32.gmra.mrb[0].mxu0 %v97
    %v917 = vpop.f32.mrb[0].mxu0
    %v918 = vadd.f32 0.0, %v917
    %v919 = vpop.f32.mrb[0].mxu0
    %920 = vmatprep.mubr.f32.mxu0 0.0
    %921 = vmatmul.mubr.f32.gmra.mrb[0].mxu0 %v100
    %v922 = vpop.f32.mrb[0].mxu0
    %v923 = vadd.f32 0.0, %v922
    %v924 = vpop.f32.mrb[0].mxu0
    %925 = vmatprep.mubr.f32.mxu0 0.0
    %926 = vmatmul.mubr.f32.gmra.mrb[0].mxu0 %v103
    %v927 = vpop.f32.mrb[0].mxu0
    %v928 = vadd.f32 0.0, %v927
    %v929 = vpop.f32.mrb[0].mxu0
    %930 = vmatprep.mubr.f32.mxu0 0.0
    %931 = vmatmul.mubr.f32.gmra.mrb[0].mxu0 %v106
    %v932 = vpop.f32.mrb[0].mxu0
    %v933 = vadd.f32 0.0, %v932
    %v934 = vpop.f32.mrb[0].mxu0
    %935 = vmatprep.mubr.f32.mxu0 0.0
    %936 = vmatmul.mubr.f32.gmra.mrb[0].mxu0 %v109
    %v937 = vpop.f32.mrb[0].mxu0
    %v938 = vadd.f32 0.0, %v937
    %v939 = vpop.f32.mrb[0].mxu0
    %940 = vmatprep.mubr.f32.mxu0 0.0
    %941 = vmatmul.mubr.f32.gmra.mrb[0].mxu0 %v112
    %v942 = vpop.f32.mrb[0].mxu0
    %v943 = vadd.f32 0.0, %v942
    %v944 = vpop.f32.mrb[0].mxu0
    %945 = vmatprep.mubr.f32.mxu0 0.0
    %946 = vmatmul.mubr.f32.gmra.mrb[0].mxu0 %v115
    %v947 = vpop.f32.mrb[0].mxu0
    %v948 = vadd.f32 0.0, %v947
    %v949 = vpop.f32.mrb[0].mxu0
    %950 = vdwg.mxu0
    %955 = vrot.lane.b32.xlu0 %v913, 64
    %v956 = vpop.permute.xlu0 %955
    %957 = vrot.lane.b32.xlu0 %v918, 64
    %v958 = vpop.permute.xlu0 %957
    %959 = vrot.lane.b32.xlu0 %v923, 64
    %v960 = vpop.permute.xlu0 %959
    %961 = vrot.lane.b32.xlu0 %v928, 64
    %v962 = vpop.permute.xlu0 %961
    %v967 = vsel %vm594, %v893, %v956
    %v968 = vsel %vm594, %v898, %v958
    %v969 = vsel %vm594, %v903, %v960
    %v970 = vsel %vm594, %v908, %v962
    %v971 = vld [vmem:[%s3 + $0xd8] sm:$0xff]
    %v972 = vld [vmem:[%s3 + $0xe0] sm:$0xff]
    %v973 = vld [vmem:[%s3 + $0xe8] sm:$0xff]
    %v974 = vld [vmem:[%s3 + $0xf0] sm:$0xff]
    %v975 = vld [vmem:[%s3 + $0xf8] sm:$0xff]
    %v976 = vld [vmem:[%s3 + $0x100] sm:$0xff]
    %v977 = vld [vmem:[%s3 + $0x108] sm:$0xff]
    %v978 = vld [vmem:[%s3 + $0x110] sm:$0xff]
    %v979 = vld [vmem:[%s3 + $0x118] sm:$0xff]
    %v980 = vld [vmem:[%s3 + $0x120] sm:$0xff]
    %v981 = vld [vmem:[%s3 + $0x128] sm:$0xff]
    %v982 = vld [vmem:[%s3 + $0x130] sm:$0xff]
    %v983 = vld [vmem:[%s3 + $0x138] sm:$0xff]
    %v984 = vld [vmem:[%s3 + $0x140] sm:$0xff]
    %v985 = vld [vmem:[%s3 + $0x148] sm:$0xff]
    %v986 = vld [vmem:[%s3 + $0x150] sm:$0xff]
    %v987 = vld [vmem:[%s3 + $0x158] sm:$0xff]
    %v988 = vld [vmem:[%s3 + $0x160] sm:$0xff]
    %v989 = vld [vmem:[%s3 + $0x168] sm:$0xff]
    %v990 = vld [vmem:[%s3 + $0x170] sm:$0xff]
    %v991 = vld [vmem:[%s3 + $0x178] sm:$0xff]
    %v992 = vld [vmem:[%s3 + $0x180] sm:$0xff]
    %v993 = vld [vmem:[%s3 + $0x188] sm:$0xff]
    %v994 = vld [vmem:[%s3 + $0x190] sm:$0xff]
    %v995 = vld [vmem:[%s3 + $0x1f8] sm:$0x1]
    %v996 = vlaneseq
    %v997 = vshrl.u32 %v996, 7
    %v998 = vsub.s32 0, %v997
    %v999 = vrot.slane %v995, %v998
    %v1001 = vsel %vm594, %v933, 0
    %v1004 = vsel %vm594, %v938, 0
    %v1007 = vsel %vm594, %v943, 0
    %v1010 = vsel %vm594, %v948, 0
    %1012 = vmatprep.subr.mxu0 0.0
    %1013 = vmatpush1.msra.mxu0 %v971
    %1014 = vmatprep.subr.mxu0 0.0
    %1015 = vmatpush1.msra.mxu0 %v972
    %1016 = vmatprep.subr.mxu0 0.0
    %1017 = vmatpush1.msra.mxu0 %v973
    %1018 = vmatprep.subr.mxu0 0.0
    %1019 = vmatpush1.msra.mxu0 %v974
    %1020 = vmatprep.subr.mxu0 0.0
    %1021 = vmatpush1.msra.mxu0 %v975
    %1022 = vmatprep.subr.mxu0 0.0
    %1023 = vmatpush1.msra.mxu0 %v976
    %1024 = vmatprep.subr.mxu0 0.0
    %1025 = vmatpush1.msra.mxu0 %v977
    %1026 = vmatprep.subr.mxu0 0.0
    %1027 = vmatpush1.msra.mxu0 %v978
    %1028 = vmatprep.subr.mxu0 0.0
    %1029 = vmatpush1.msra.mxu0 %v979
    %1030 = vmatprep.subr.mxu0 0.0
    %1031 = vmatpush1.msra.mxu0 %v980
    %1032 = vmatprep.subr.mxu0 0.0
    %1033 = vmatpush1.msra.mxu0 %v981
    %1034 = vmatprep.subr.mxu0 0.0
    %1035 = vmatpush1.msra.mxu0 %v982
    %1036 = vmatprep.subr.mxu0 0.0
    %1037 = vmatpush1.msra.mxu0 %v983
    %1038 = vmatprep.subr.mxu0 0.0
    %1039 = vmatpush1.msra.mxu0 %v984
    %1040 = vmatprep.subr.mxu0 0.0
    %1041 = vmatpush1.msra.mxu0 %v985
    %1042 = vmatprep.subr.mxu0 0.0
    %1043 = vmatpush1.msra.mxu0 %v986
    %1044 = vmatprep.subr.mxu0 0.0
    %1045 = vmatpush1.msra.mxu0 %v987
    %1046 = vmatprep.subr.mxu0 0.0
    %1047 = vmatpush1.msra.mxu0 %v988
    %1048 = vmatprep.subr.mxu0 0.0
    %1049 = vmatpush1.msra.mxu0 %v989
    %1050 = vmatprep.subr.mxu0 0.0
    %1051 = vmatpush1.msra.mxu0 %v990
    %1052 = vmatprep.subr.mxu0 0.0
    %1053 = vmatpush1.msra.mxu0 %v991
    %1054 = vmatprep.subr.mxu0 0.0
    %1055 = vmatpush1.msra.mxu0 %v992
    %1056 = vmatprep.subr.mxu0 0.0
    %1057 = vmatpush1.msra.mxu0 %v993
    %1058 = vmatprep.subr.mxu0 0.0
    %1059 = vmatpush1.msra.mxu0 %v994
    %1060 = vmatprep.subr.mxu0 0.0
    %1061 = vmatpush1.msra.mxu0 0.0
    %1062 = vmatprep.subr.mxu0 0.0
    %1063 = vmatpush1.msra.mxu0 0.0
    %1064 = vmatprep.subr.mxu0 0.0
    %1065 = vmatpush1.msra.mxu0 0.0
    %1066 = vmatprep.subr.mxu0 0.0
    %1067 = vmatpush1.msra.mxu0 0.0
    %1068 = vmatprep.subr.mxu0 0.0
    %1069 = vmatpush1.msra.mxu0 0.0
    %1070 = vmatprep.subr.mxu0 0.0
    %1071 = vmatpush1.msra.mxu0 0.0
    %1072 = vmatprep.subr.mxu0 0.0
    %1073 = vmatpush1.msra.mxu0 0.0
    %1074 = vmatprep.subr.mxu0 0.0
    %1075 = vmatpush1.msra.mxu0 0.0
    %1076 = vmatprep.mubr.f32.mxu0 %v1001
    %1077 = vmatmul.mubr.f32.gmra.mrb[0].mxu0 %v967
    %v1078 = vpop.f32.mrb[0].mxu0
    %v1079 = vadd.f32 %v999, %v1078
    %v1080 = vpop.f32.mrb[0].mxu0
    %1081 = vmatprep.mubr.f32.mxu0 %v1004
    %1082 = vmatmul.mubr.f32.gmra.mrb[0].mxu0 %v968
    %v1083 = vpop.f32.mrb[0].mxu0
    %v1084 = vadd.f32 %v999, %v1083
    %v1085 = vpop.f32.mrb[0].mxu0
    %1086 = vmatprep.mubr.f32.mxu0 %v1007
    %1087 = vmatmul.mubr.f32.gmra.mrb[0].mxu0 %v969
    %v1088 = vpop.f32.mrb[0].mxu0
    %v1089 = vadd.f32 %v999, %v1088
    %v1090 = vpop.f32.mrb[0].mxu0
    %1091 = vmatprep.mubr.f32.mxu0 %v1010
    %1092 = vmatmul.mubr.f32.gmra.mrb[0].mxu0 %v970
    %v1093 = vpop.f32.mrb[0].mxu0
    %v1094 = vadd.f32 %v999, %v1093
    %v1095 = vpop.f32.mrb[0].mxu0
    %1096 = vdwg.mxu0
    %v1097 = vxor.u32 %v1079, 2147483648
    %v1098 = vxor.u32 %v1084, 2147483648
    %v1099 = vxor.u32 %v1089, 2147483648
    %v1100 = vxor.u32 %v1094, 2147483648
    %v1101 = vmul.f32 %v1097, 1.442695
    %v1102 = vpow.pop %v1101
    %v1103 = vmul.f32 %v1098, 1.442695
    %v1104 = vpow.pop %v1103
    %v1105 = vmul.f32 %v1099, 1.442695
    %v1106 = vpow.pop %v1105
    %v1107 = vmul.f32 %v1100, 1.442695
    %v1108 = vpow.pop %v1107
    %v1109 = vadd.f32 %v1102, 1.0
    %v1110 = vadd.f32 %v1104, 1.0
    %v1111 = vadd.f32 %v1106, 1.0
    %v1112 = vadd.f32 %v1108, 1.0
    %v1113 = vrcp.pop %v1109
    %v1114 = vmul.f32 1.0, %v1113
    %v1115 = vrcp.pop %v1110
    %v1116 = vmul.f32 1.0, %v1115
    %v1117 = vrcp.pop %v1111
    %v1118 = vmul.f32 1.0, %v1117
    %v1119 = vrcp.pop %v1112
    %v1120 = vmul.f32 1.0, %v1119
    %v1121 = vmul.f32 %v1114, %v802
    %v1122 = vmul.f32 %v1116, %v803
    %v1123 = vmul.f32 %v1118, %v804
    %v1124 = vmul.f32 %v1120, %v805
    %1125 = vmatprep.subr.mxu0 0.0
    %1126 = vmatpush1.msra.mxu0 %v1121
    %1127 = vmatprep.subr.mxu0 0.0
    %1128 = vmatpush1.msra.mxu0 %v1122
    %1129 = vmatprep.subr.mxu0 0.0
    %1130 = vmatpush1.msra.mxu0 %v1123
    %1131 = vmatprep.subr.mxu0 0.0
    %1132 = vmatpush1.msra.mxu0 %v1124
    %1133 = vmatprep.subr.mxu0 0.0
    %1134 = vmatpush1.msra.mxu0 0.0
    %1135 = vmatprep.subr.mxu0 0.0
    %1136 = vmatpush1.msra.mxu0 0.0
    %1137 = vmatprep.subr.mxu0 0.0
    %1138 = vmatpush1.msra.mxu0 0.0
    %1139 = vmatprep.subr.mxu0 0.0
    %1140 = vmatpush1.msra.mxu0 0.0
    %1141 = vmatprep.subr.mxu0 0.0
    %1142 = vmatpush1.msra.mxu0 0.0
    %1143 = vmatprep.subr.mxu0 0.0
    %1144 = vmatpush1.msra.mxu0 0.0
    %1145 = vmatprep.subr.mxu0 0.0
    %1146 = vmatpush1.msra.mxu0 0.0
    %1147 = vmatprep.subr.mxu0 0.0
    %1148 = vmatpush1.msra.mxu0 0.0
    %1149 = vmatprep.subr.mxu0 0.0
    %1150 = vmatpush1.msra.mxu0 0.0
    %1151 = vmatprep.subr.mxu0 0.0
    %1152 = vmatpush1.msra.mxu0 0.0
    %1153 = vmatprep.subr.mxu0 0.0
    %1154 = vmatpush1.msra.mxu0 0.0
    %1155 = vmatprep.subr.mxu0 0.0
    %1156 = vmatpush1.msra.mxu0 0.0
    %1157 = vmatprep.subr.mxu0 0.0
    %1158 = vmatpush1.msra.mxu0 0.0
    %1159 = vmatprep.subr.mxu0 0.0
    %1160 = vmatpush1.msra.mxu0 0.0
    %1161 = vmatprep.subr.mxu0 0.0
    %1162 = vmatpush1.msra.mxu0 0.0
    %1163 = vmatprep.subr.mxu0 0.0
    %1164 = vmatpush1.msra.mxu0 0.0
    %1165 = vmatprep.subr.mxu0 0.0
    %1166 = vmatpush1.msra.mxu0 0.0
    %1167 = vmatprep.subr.mxu0 0.0
    %1168 = vmatpush1.msra.mxu0 0.0
    %1169 = vmatprep.subr.mxu0 0.0
    %1170 = vmatpush1.msra.mxu0 0.0
    %1171 = vmatprep.subr.mxu0 0.0
    %1172 = vmatpush1.msra.mxu0 0.0
    %1173 = vmatprep.subr.mxu0 0.0
    %1174 = vmatpush1.msra.mxu0 0.0
    %1175 = vmatprep.subr.mxu0 0.0
    %1176 = vmatpush1.msra.mxu0 0.0
    %1177 = vmatprep.subr.mxu0 0.0
    %1178 = vmatpush1.msra.mxu0 0.0
    %1179 = vmatprep.subr.mxu0 0.0
    %1180 = vmatpush1.msra.mxu0 0.0
    %1181 = vmatprep.subr.mxu0 0.0
    %1182 = vmatpush1.msra.mxu0 0.0
    %1183 = vmatprep.subr.mxu0 0.0
    %1184 = vmatpush1.msra.mxu0 0.0
    %1185 = vmatprep.subr.mxu0 0.0
    %1186 = vmatpush1.msra.mxu0 0.0
    %1187 = vmatprep.subr.mxu0 0.0
    %1188 = vmatpush1.msra.mxu0 0.0
    %1189 = vmatprep.mubr.f32.mxu0 0.0
    %1190 = vmatmul.mubr.f32.gmra.mrb[0].mxu0 %v82
    %v1191 = vpop.f32.mrb[0].mxu0
    %v1192 = vadd.f32 0.0, %v1191
    %v1193 = vpop.f32.mrb[0].mxu0
    %1194 = vmatprep.mubr.f32.mxu0 0.0
    %1195 = vmatmul.mubr.f32.gmra.mrb[0].mxu0 %v85
    %v1196 = vpop.f32.mrb[0].mxu0
    %v1197 = vadd.f32 0.0, %v1196
    %v1198 = vpop.f32.mrb[0].mxu0
    %1199 = vmatprep.mubr.f32.mxu0 0.0
    %1200 = vmatmul.mubr.f32.gmra.mrb[0].mxu0 %v88
    %v1201 = vpop.f32.mrb[0].mxu0
    %v1202 = vadd.f32 0.0, %v1201
    %v1203 = vpop.f32.mrb[0].mxu0
    %1204 = vmatprep.mubr.f32.mxu0 0.0
    %1205 = vmatmul.mubr.f32.gmra.mrb[0].mxu0 %v91
    %v1206 = vpop.f32.mrb[0].mxu0
    %v1207 = vadd.f32 0.0, %v1206
    %v1208 = vpop.f32.mrb[0].mxu0
    %1209 = vmatprep.mubr.f32.mxu0 0.0
    %1210 = vmatmul.mubr.f32.gmra.mrb[0].mxu0 %v94
    %v1211 = vpop.f32.mrb[0].mxu0
    %v1212 = vadd.f32 0.0, %v1211
    %v1213 = vpop.f32.mrb[0].mxu0
    %1214 = vmatprep.mubr.f32.mxu0 0.0
    %1215 = vmatmul.mubr.f32.gmra.mrb[0].mxu0 %v97
    %v1216 = vpop.f32.mrb[0].mxu0
    %v1217 = vadd.f32 0.0, %v1216
    %v1218 = vpop.f32.mrb[0].mxu0
    %1219 = vmatprep.mubr.f32.mxu0 0.0
    %1220 = vmatmul.mubr.f32.gmra.mrb[0].mxu0 %v100
    %v1221 = vpop.f32.mrb[0].mxu0
    %v1222 = vadd.f32 0.0, %v1221
    %v1223 = vpop.f32.mrb[0].mxu0
    %1224 = vmatprep.mubr.f32.mxu0 0.0
    %1225 = vmatmul.mubr.f32.gmra.mrb[0].mxu0 %v103
    %v1226 = vpop.f32.mrb[0].mxu0
    %v1227 = vadd.f32 0.0, %v1226
    %v1228 = vpop.f32.mrb[0].mxu0
    %1229 = vmatprep.mubr.f32.mxu0 0.0
    %1230 = vmatmul.mubr.f32.gmra.mrb[0].mxu0 %v106
    %v1231 = vpop.f32.mrb[0].mxu0
    %v1232 = vadd.f32 0.0, %v1231
    %v1233 = vpop.f32.mrb[0].mxu0
    %1234 = vmatprep.mubr.f32.mxu0 0.0
    %1235 = vmatmul.mubr.f32.gmra.mrb[0].mxu0 %v109
    %v1236 = vpop.f32.mrb[0].mxu0
    %v1237 = vadd.f32 0.0, %v1236
    %v1238 = vpop.f32.mrb[0].mxu0
    %1239 = vmatprep.mubr.f32.mxu0 0.0
    %1240 = vmatmul.mubr.f32.gmra.mrb[0].mxu0 %v112
    %v1241 = vpop.f32.mrb[0].mxu0
    %v1242 = vadd.f32 0.0, %v1241
    %v1243 = vpop.f32.mrb[0].mxu0
    %1244 = vmatprep.mubr.f32.mxu0 0.0
    %1245 = vmatmul.mubr.f32.gmra.mrb[0].mxu0 %v115
    %v1246 = vpop.f32.mrb[0].mxu0
    %v1247 = vadd.f32 0.0, %v1246
    %v1248 = vpop.f32.mrb[0].mxu0
    %1249 = vdwg.mxu0
    %1254 = vrot.lane.b32.xlu0 %v1212, 32
    %v1255 = vpop.permute.xlu0 %1254
    %1256 = vrot.lane.b32.xlu0 %v1217, 32
    %v1257 = vpop.permute.xlu0 %1256
    %1258 = vrot.lane.b32.xlu0 %v1222, 32
    %v1259 = vpop.permute.xlu0 %1258
    %1260 = vrot.lane.b32.xlu0 %v1227, 32
    %v1261 = vpop.permute.xlu0 %1260
    %1270 = vrot.lane.b32.xlu0 %v1232, 64
    %v1271 = vpop.permute.xlu0 %1270
    %1272 = vrot.lane.b32.xlu0 %v1237, 64
    %v1273 = vpop.permute.xlu0 %1272
    %1274 = vrot.lane.b32.xlu0 %v1242, 64
    %v1275 = vpop.permute.xlu0 %1274
    %1276 = vrot.lane.b32.xlu0 %v1247, 64
    %v1277 = vpop.permute.xlu0 %1276
    %v1282 = vsel %vm80, %v1192, %v1255
    %v1283 = vsel %vm80, %v1197, %v1257
    %v1284 = vsel %vm80, %v1202, %v1259
    %v1285 = vsel %vm80, %v1207, %v1261
    %v1286 = vsel %vm594, %v1282, %v1271
    %v1287 = vsel %vm594, %v1283, %v1273
    %v1288 = vsel %vm594, %v1284, %v1275
    %v1289 = vsel %vm594, %v1285, %v1277
    %v1290 = vld [vmem:[%s3 + $0x198] sm:$0xff]
    %v1291 = vld [vmem:[%s3 + $0x1a0] sm:$0xff]
    %v1292 = vld [vmem:[%s3 + $0x1a8] sm:$0xff]
    %v1293 = vld [vmem:[%s3 + $0x1b0] sm:$0xff]
    %v1294 = vld [vmem:[%s3 + $0x1b8] sm:$0xff]
    %v1295 = vld [vmem:[%s3 + $0x1c0] sm:$0xff]
    %v1296 = vld [vmem:[%s3 + $0x1c8] sm:$0xff]
    %v1297 = vld [vmem:[%s3 + $0x1d0] sm:$0xff]
    %v1298 = vld [vmem:[%s3 + $0x1d8] sm:$0xff]
    %v1299 = vld [vmem:[%s3 + $0x1e0] sm:$0xff]
    %v1300 = vld [vmem:[%s3 + $0x1e8] sm:$0xff]
    %v1301 = vld [vmem:[%s3 + $0x1f0] sm:$0xff]
    %v1303 = vsel %vm611, %v1286, 0
    %v1306 = vsel %vm611, %v1287, 0
    %v1309 = vsel %vm611, %v1288, 0
    %v1312 = vsel %vm611, %v1289, 0
    %1314 = vmatprep.subr.mxu0 0.0
    %1315 = vmatpush1.msra.mxu0 %v1290
    %1316 = vmatprep.subr.mxu0 0.0
    %1317 = vmatpush1.msra.mxu0 %v1291
    %1318 = vmatprep.subr.mxu0 0.0
    %1319 = vmatpush1.msra.mxu0 %v1292
    %1320 = vmatprep.subr.mxu0 0.0
    %1321 = vmatpush1.msra.mxu0 %v1293
    %1322 = vmatprep.subr.mxu0 0.0
    %1323 = vmatpush1.msra.mxu0 %v1294
    %1324 = vmatprep.subr.mxu0 0.0
    %1325 = vmatpush1.msra.mxu0 %v1295
    %1326 = vmatprep.subr.mxu0 0.0
    %1327 = vmatpush1.msra.mxu0 %v1296
    %1328 = vmatprep.subr.mxu0 0.0
    %1329 = vmatpush1.msra.mxu0 %v1297
    %1330 = vmatprep.subr.mxu0 0.0
    %1331 = vmatpush1.msra.mxu0 %v1298
    %1332 = vmatprep.subr.mxu0 0.0
    %1333 = vmatpush1.msra.mxu0 %v1299
    %1334 = vmatprep.subr.mxu0 0.0
    %1335 = vmatpush1.msra.mxu0 %v1300
    %1336 = vmatprep.subr.mxu0 0.0
    %1337 = vmatpush1.msra.mxu0 %v1301
    %1338 = vmatprep.subr.mxu0 0.0
    %1339 = vmatpush1.msra.mxu0 0.0
    %1340 = vmatprep.subr.mxu0 0.0
    %1341 = vmatpush1.msra.mxu0 0.0
    %1342 = vmatprep.subr.mxu0 0.0
    %1343 = vmatpush1.msra.mxu0 0.0
    %1344 = vmatprep.subr.mxu0 0.0
    %1345 = vmatpush1.msra.mxu0 0.0
    %1346 = vmatprep.subr.mxu0 0.0
    %1347 = vmatpush1.msra.mxu0 0.0
    %1348 = vmatprep.subr.mxu0 0.0
    %1349 = vmatpush1.msra.mxu0 0.0
    %1350 = vmatprep.subr.mxu0 0.0
    %1351 = vmatpush1.msra.mxu0 0.0
    %1352 = vmatprep.subr.mxu0 0.0
    %1353 = vmatpush1.msra.mxu0 0.0
    %1354 = vmatprep.subr.mxu0 0.0
    %1355 = vmatpush1.msra.mxu0 0.0
    %1356 = vmatprep.subr.mxu0 0.0
    %1357 = vmatpush1.msra.mxu0 0.0
    %1358 = vmatprep.subr.mxu0 0.0
    %1359 = vmatpush1.msra.mxu0 0.0
    %1360 = vmatprep.subr.mxu0 0.0
    %1361 = vmatpush1.msra.mxu0 0.0
    %1362 = vmatprep.subr.mxu0 0.0
    %1363 = vmatpush1.msra.mxu0 0.0
    %1364 = vmatprep.subr.mxu0 0.0
    %1365 = vmatpush1.msra.mxu0 0.0
    %1366 = vmatprep.subr.mxu0 0.0
    %1367 = vmatpush1.msra.mxu0 0.0
    %1368 = vmatprep.subr.mxu0 0.0
    %1369 = vmatpush1.msra.mxu0 0.0
    %1370 = vmatprep.subr.mxu0 0.0
    %1371 = vmatpush1.msra.mxu0 0.0
    %1372 = vmatprep.subr.mxu0 0.0
    %1373 = vmatpush1.msra.mxu0 0.0
    %1374 = vmatprep.subr.mxu0 0.0
    %1375 = vmatpush1.msra.mxu0 0.0
    %1376 = vmatprep.subr.mxu0 0.0
    %1377 = vmatpush1.msra.mxu0 0.0
    %1378 = vmatprep.mubr.f32.mxu0 0.0
    %1379 = vmatmul.mubr.f32.gmra.mrb[0].mxu0 %v1303
    %v1380 = vpop.f32.mrb[0].mxu0
    %v1381 = vadd.f32 0.0, %v1380
    %v1382 = vpop.f32.mrb[0].mxu0
    %1383 = vmatprep.mubr.f32.mxu0 0.0
    %1384 = vmatmul.mubr.f32.gmra.mrb[0].mxu0 %v1306
    %v1385 = vpop.f32.mrb[0].mxu0
    %v1386 = vadd.f32 0.0, %v1385
    %v1387 = vpop.f32.mrb[0].mxu0
    %1388 = vmatprep.mubr.f32.mxu0 0.0
    %1389 = vmatmul.mubr.f32.gmra.mrb[0].mxu0 %v1309
    %v1390 = vpop.f32.mrb[0].mxu0
    %v1391 = vadd.f32 0.0, %v1390
    %v1392 = vpop.f32.mrb[0].mxu0
    %1393 = vmatprep.mubr.f32.mxu0 0.0
    %1394 = vmatmul.mubr.f32.gmra.mrb[0].mxu0 %v1312
    %v1395 = vpop.f32.mrb[0].mxu0
    %v1396 = vadd.f32 0.0, %v1395
    %v1397 = vpop.f32.mrb[0].mxu0
    %1398 = vdwg.mxu0
    %1403 = vrot.lane.b32.xlu0 %v1381, 64
    %v1404 = vpop.permute.xlu0 %1403
    %1405 = vrot.lane.b32.xlu0 %v1386, 64
    %v1406 = vpop.permute.xlu0 %1405
    %1407 = vrot.lane.b32.xlu0 %v1391, 64
    %v1408 = vpop.permute.xlu0 %1407
    %1409 = vrot.lane.b32.xlu0 %v1396, 64
    %v1410 = vpop.permute.xlu0 %1409
    %v1415 = vadd.f32 %v1079, %v1404
    %v1416 = vadd.f32 %v1084, %v1406
    %v1417 = vadd.f32 %v1089, %v1408
    %v1418 = vadd.f32 %v1094, %v1410
    %v1419 = vtanh.pop %v1415
    %v1420 = vtanh.pop %v1416
    %v1421 = vtanh.pop %v1417
    %v1422 = vtanh.pop %v1418
    %v1423 = vmul.f32 %v1114, %v811
    %v1424 = vmul.f32 %v1116, %v813
    %v1425 = vmul.f32 %v1118, %v815
    %v1426 = vmul.f32 %v1120, %v817
    %v1427 = vsub.f32 1.0, %v1114
    %v1428 = vsub.f32 1.0, %v1116
    %v1429 = vsub.f32 1.0, %v1118
    %v1430 = vsub.f32 1.0, %v1120
    %1435 = vrot.lane.b32.xlu0 %v1419, 96
    %v1436 = vpop.permute.xlu0 %1435
    %1437 = vrot.lane.b32.xlu0 %v1420, 96
    %v1438 = vpop.permute.xlu0 %1437
    %1439 = vrot.lane.b32.xlu0 %v1421, 96
    %v1440 = vpop.permute.xlu0 %1439
    %1441 = vrot.lane.b32.xlu0 %v1422, 96
    %v1442 = vpop.permute.xlu0 %1441
    %v1447 = vmul.f32 %v1427, %v1436
    %v1448 = vmul.f32 %v1428, %v1438
    %v1449 = vmul.f32 %v1429, %v1440
    %v1450 = vmul.f32 %v1430, %v1442
    %v1451 = vadd.f32 %v1423, %v1447
    %v1452 = vadd.f32 %v1424, %v1448
    %v1453 = vadd.f32 %v1425, %v1449
    %v1454 = vadd.f32 %v1426, %v1450
    %1459 = vrot.lane.b32.xlu0 %v1451, 96
    %v1460 = vpop.permute.xlu0 %1459
    %1461 = vrot.lane.b32.xlu0 %v1452, 96
    %v1462 = vpop.permute.xlu0 %1461
    %1463 = vrot.lane.b32.xlu0 %v1453, 96
    %v1464 = vpop.permute.xlu0 %1463
    %1465 = vrot.lane.b32.xlu0 %v1454, 96
    %v1466 = vpop.permute.xlu0 %1465
    %1471 = vst.msk [vmem:[%s801] sm:$0xff] %vm80, %v1460
    %1472 = vst.msk [vmem:[%s801 + $0x8] sm:$0xff] %vm80, %v1462
    %1473 = vst.msk [vmem:[%s801 + $0x10] sm:$0xff] %vm80, %v1464
    %1474 = vst.msk [vmem:[%s801 + $0x18] sm:$0xff] %vm80, %v1466
    %s1475 = scalar_lea.vmem [#allocation3], 32
    %1476 = vst.msk [vmem:[%s1475] sm:$0xff] %vm80, %v1460
    %1477 = vst.msk [vmem:[%s1475 + $0x8] sm:$0xff] %vm80, %v1462
    %1478 = vst.msk [vmem:[%s1475 + $0x10] sm:$0xff] %vm80, %v1464
    %1479 = vst.msk [vmem:[%s1475 + $0x18] sm:$0xff] %vm80, %v1466
    // Predicated region
    $region22: #{tpu_custom_call.1} parent=1 // pred_check
      _
    $region23: #{tpu_custom_call.1} parent=1 // pred_check_branch
      %1481 = sbr.rel (0) target = $region25
    $region24: #{tpu_custom_call.1} parent=1 // pred_region
      %s1483 = ssub.s32 1024, 1024
      %1484 = vsyncadd [#allocation4], %s1483
      %s1485 = sshll.u32 [#allocation3], 4
      %s1486 = int_to_ptr.vmem [resolvable:$true] %s1485
      %1491 = dma.vmem_to_hbm [thread:$0]  %s1486, 1024, %s4, [#allocation4], 128, 128, 8
    $region25: #{tpu_custom_call.1} parent=1 // pred_fallthru
      _
    // Predicated region
    $region26: #{tpu_custom_call.1} parent=1 // pred_check
      _
    $region27: #{tpu_custom_call.1} parent=1 // pred_check_branch
      %1493 = sbr.rel (0) target = $region29
    $region28: #{tpu_custom_call.1} parent=1 // pred_region
      %1494 = dma.done [#allocation4], 1024
    $region29: #{tpu_custom_call.1} parent=1 // pred_fallthru
      _
    %1495 = vsyncpa [#allocation4], 1

</llo_original>
